<compile_context>
chip_gen: v6e
topology: v6e:2x2x1
jax: 0.10.0
libtpu: 0.0.40
codegen_flags: <defaults>
</compile_context>

<pallas_src>
import functools

import jax
import jax.numpy as jnp
from jax.experimental import pallas as pl
from jax.experimental.pallas import tpu as pltpu


# ----------------------------------------------------------------------------
# Pallas kernel: one residual attention block, one batch element per grid step.
# ----------------------------------------------------------------------------
def _block_kernel(x_ref, g1_ref, be1_ref,
                  wq_ref, wk_ref, wv_ref, bq_ref, bk_ref, bv_ref,
                  wo_ref, bo_ref,
                  g2_ref, be2_ref, w1_ref, bm1_ref, w2_ref, bm2_ref,
                  o_ref, *, n_heads):
    x = x_ref[...].astype(jnp.float32)          # (S, D) slab for one batch element
    S, D = x.shape
    H = n_heads
    dh = D // H
    scale = 1.0 / float(dh) ** 0.5

    def layernorm(t, g, b):
        mu = jnp.mean(t, axis=-1, keepdims=True)
        var = jnp.mean((t - mu) ** 2, axis=-1, keepdims=True)
        return (t - mu) * jax.lax.rsqrt(var + 1e-5) * g + b

    def proj(a_bf16, w_ref, b_ref):
        # bf16 x bf16 MXU matmul with f32 accumulation; bias added in f32.
        return (jnp.dot(a_bf16, w_ref[...], preferred_element_type=jnp.float32)
                + b_ref[...])

    # ---- attention sub-block: x = x + out_proj(MHA(LN1(x))) ----
    xn = layernorm(x, g1_ref[...], be1_ref[...]).astype(jnp.bfloat16)
    q = (proj(xn, wq_ref, bq_ref) * scale).astype(jnp.bfloat16)   # scale applied once
    k = proj(xn, wk_ref, bk_ref).astype(jnp.bfloat16)
    v = proj(xn, wv_ref, bv_ref).astype(jnp.bfloat16)

    # Head-major (H, S, dh) layout so ALL heads run as one batched MXU matmul.
    # The per-head work below is pure layout (lane slices / tile concat); the
    # score and context matmuls themselves are single 3-D einsums.
    def split_heads(t):
        return jnp.stack([t[:, h * dh:(h + 1) * dh] for h in range(H)], axis=0)

    qh, kh, vh = split_heads(q), split_heads(k), split_heads(v)

    s = jnp.einsum('hqd,hkd->hqk', qh, kh,
                   preferred_element_type=jnp.float32)            # (H, S, S), no k.T
    s = s - jnp.max(s, axis=-1, keepdims=True)
    p = jnp.exp(s)
    # EUP approx reciprocal instead of a VALU divide per row.
    p = p * pl.reciprocal(jnp.sum(p, axis=-1, keepdims=True), approx=True)
    ctx = jnp.einsum('hqk,hkd->hqd', p.astype(jnp.bfloat16), vh,
                     preferred_element_type=jnp.float32)          # (H, S, dh)

    attn = jnp.concatenate([ctx[h] for h in range(H)], axis=-1)   # (S, D) head merge
    attn = proj(attn.astype(jnp.bfloat16), wo_ref, bo_ref)
    x = x + attn

    # ---- MLP sub-block: x = x + W2(relu(W1(LN2(x)))) ----
    xn2 = layernorm(x, g2_ref[...], be2_ref[...]).astype(jnp.bfloat16)
    h1 = jnp.maximum(proj(xn2, w1_ref, bm1_ref), 0.0)
    h2 = proj(h1.astype(jnp.bfloat16), w2_ref, bm2_ref)

    o_ref[...] = (x + h2).astype(o_ref.dtype)


_PARAM_ORDER = ("ln1_g", "ln1_b", "wq", "wk", "wv", "bq", "bk", "bv",
                "wo", "bo", "ln2_g", "ln2_b", "w1", "b1", "w2", "b2")


def _res_attention_block(x_bsd, p, n_heads):
    B, S, D = x_bsd.shape
    params = [p[name] for name in _PARAM_ORDER]

    def weight_spec(a):
        # The weights/biases are identical for every grid step (constant index
        # map): single-buffer them so only x / out are double-buffered.
        return pl.BlockSpec(a.shape, lambda b: (0,) * a.ndim,
                            pipeline_mode=pl.Buffered(1))

    in_specs = ([pl.BlockSpec((None, S, D), lambda b: (b, 0, 0))]
                + [weight_spec(a) for a in params])

    return pl.pallas_call(
        functools.partial(_block_kernel, n_heads=n_heads),
        out_shape=jax.ShapeDtypeStruct((B, S, D), x_bsd.dtype),
        grid=(B,),
        in_specs=in_specs,
        out_specs=pl.BlockSpec((None, S, D), lambda b: (b, 0, 0)),
        compiler_params=pltpu.CompilerParams(
            dimension_semantics=("parallel",),
            vmem_limit_bytes=64 * 1024 * 1024,
        ),
    )(x_bsd, *params)


# ----------------------------------------------------------------------------
# Parameter init (PyTorch Linear weights are (out, in) with x @ W.T + b; here
# matmul weights are stored pre-transposed (in, out) and in bf16 for the MXU).
# ----------------------------------------------------------------------------
def init_block_params(key, dim):
    ks = jax.random.split(key, 6)
    std = 0.02

    def w(k, shape):
        return (jax.random.normal(k, shape, jnp.float32) * std).astype(jnp.bfloat16)

    def z(*shape):
        return jnp.zeros(shape, jnp.float32)

    return dict(
        ln1_g=jnp.ones((1, dim), jnp.float32), ln1_b=z(1, dim),
        wq=w(ks[0], (dim, dim)), wk=w(ks[1], (dim, dim)), wv=w(ks[2], (dim, dim)),
        bq=z(1, dim), bk=z(1, dim), bv=z(1, dim),
        wo=w(ks[3], (dim, dim)), bo=z(1, dim),
        ln2_g=jnp.ones((1, dim), jnp.float32), ln2_b=z(1, dim),
        w1=w(ks[4], (dim, 4 * dim)), b1=z(1, 4 * dim),
        w2=w(ks[5], (4 * dim, dim)), b2=z(1, dim),
    )


def init_transformer_params(key, dim, layers):
    return [init_block_params(k, dim) for k in jax.random.split(key, layers)]


def init_csfp_params(key, *, embed_dim, vocab_size, context_len,
                     transformer_width, transformer_heads, transformer_layers):
    # Note: the reference CSFP passes (width, heads, layers) into
    # Transformer(dim, layers, attn_heads) — we build with the evident intent:
    # `transformer_layers` blocks of `transformer_heads` heads each.
    ks = jax.random.split(key, 8)
    W, E = transformer_width, embed_dim

    def nrm(k, shape, std):
        return jax.random.normal(k, shape, jnp.float32) * std

    ln = lambda: (jnp.ones((W,), jnp.float32), jnp.zeros((W,), jnp.float32))
    return dict(
        embedding=nrm(ks[0], (vocab_size, W), 0.02),
        positional_embedding=nrm(ks[1], (context_len, W), 0.01),
        fragment_tf=init_transformer_params(ks[2], W, transformer_layers),
        pre_tf=init_transformer_params(ks[3], W, transformer_layers),
        post_tf=init_transformer_params(ks[4], W, transformer_layers),
        ln_frag=ln(), ln_pre=ln(), ln_post=ln(),
        text_proj=nrm(ks[5], (W, E), W ** -0.5),
        mlp_w1=nrm(ks[6], (2 * E, 4 * E), 0.02),
        mlp_b1=jnp.zeros((4 * E,), jnp.float32),
        mlp_w2=nrm(ks[7], (4 * E, E), 0.02),
        mlp_b2=jnp.zeros((E,), jnp.float32),
        logit_scale=jnp.asarray(jnp.log(1.0 / 0.07), jnp.float32),
    )


# ----------------------------------------------------------------------------
# CSFP forward (glue around the Pallas transformer-block kernel is plain JAX:
# embedding gather, positional add, final LN, EOT-row gather, tiny projections).
# ----------------------------------------------------------------------------
def _layernorm(x, g, b, eps=1e-5):
    mu = jnp.mean(x, axis=-1, keepdims=True)
    var = jnp.mean((x - mu) ** 2, axis=-1, keepdims=True)
    return (x - mu) * jax.lax.rsqrt(var + eps) * g + b


def _transformer(x_bsd, blocks, n_heads):
    for blk in blocks:
        x_bsd = _res_attention_block(x_bsd, blk, n_heads)
    return x_bsd


def _encode_text(tokens, blocks, ln, params, n_heads):
    x = params["embedding"][tokens]                  # (B, S, W) gather (plain JAX)
    x = x + params["positional_embedding"]           # (S, W) broadcast add
    # (B, S, W) layout end-to-end: no (S, B, W) HBM transposes around the transformer.
    x = _transformer(x, blocks, n_heads)
    g, b = ln
    x = _layernorm(x, g, b)
    eot = jnp.argmax(tokens, axis=-1)                # position of highest token id
    x = x[jnp.arange(x.shape[0]), eot]               # (B, W)
    return x @ params["text_proj"]                   # (B, E)


@functools.partial(jax.jit, static_argnames=("n_heads",))
def csfp_forward(params, pre_tokens, fragment_tokens, post_tokens, *, n_heads):
    frag = _encode_text(fragment_tokens, params["fragment_tf"],
                        params["ln_frag"], params, n_heads)
    pre = _encode_text(pre_tokens, params["pre_tf"],
                       params["ln_pre"], params, n_heads)
    post = _encode_text(post_tokens, params["post_tf"],
                        params["ln_post"], params, n_heads)

    context = jnp.concatenate([pre, post], axis=1)                       # (B, 2E)
    h = jnp.maximum(context @ params["mlp_w1"] + params["mlp_b1"], 0.0)  # simple_mlp
    context = h @ params["mlp_w2"] + params["mlp_b2"]                    # (B, E)

    frag = frag / jnp.linalg.norm(frag, axis=-1, keepdims=True)
    context = context / jnp.linalg.norm(context, axis=-1, keepdims=True)
    logit_scale = jnp.exp(params["logit_scale"])
    logits_per_context = logit_scale * context @ frag.T
    logits_per_fragment = logits_per_context.T
    return logits_per_context, logits_per_fragment


if __name__ == "__main__":
    embed_dim = 16
    vocab_size = 64
    context_len = 8
    transformer_width = 32
    transformer_heads = 4
    transformer_layers = 2
    batch = 2

    key = jax.random.PRNGKey(0)
    k_params, k_pre, k_frag, k_post = jax.random.split(key, 4)
    params = init_csfp_params(
        k_params, embed_dim=embed_dim, vocab_size=vocab_size,
        context_len=context_len, transformer_width=transformer_width,
        transformer_heads=transformer_heads, transformer_layers=transformer_layers)

    pre_tokens = jax.random.randint(k_pre, (batch, context_len), 0, vocab_size, jnp.int32)
    frag_tokens = jax.random.randint(k_frag, (batch, context_len), 0, vocab_size, jnp.int32)
    post_tokens = jax.random.randint(k_post, (batch, context_len), 0, vocab_size, jnp.int32)

    logits_per_context, logits_per_fragment = csfp_forward(
        params, pre_tokens, frag_tokens, post_tokens, n_heads=transformer_heads)
    logits_per_context = jax.block_until_ready(logits_per_context)
    logits_per_fragment = jax.block_until_ready(logits_per_fragment)

    assert logits_per_context.shape == (batch, batch)
    assert logits_per_fragment.shape == (batch, batch)
    assert bool(jnp.all(jnp.isfinite(logits_per_context)))
    print("KERNEL_OK")
</pallas_src>

<mosaic_0001>
module attributes {stable_mosaic.version = 11 : i64} {
  func.func @_block_kernel(%arg0: i32, %arg1: memref<1x8x32xf32, #tpu.memory_space<vmem>>, %arg2: memref<1x32xf32, #tpu.memory_space<vmem>>, %arg3: memref<1x32xf32, #tpu.memory_space<vmem>>, %arg4: memref<32x32xbf16, #tpu.memory_space<vmem>>, %arg5: memref<32x32xbf16, #tpu.memory_space<vmem>>, %arg6: memref<32x32xbf16, #tpu.memory_space<vmem>>, %arg7: memref<1x32xf32, #tpu.memory_space<vmem>>, %arg8: memref<1x32xf32, #tpu.memory_space<vmem>>, %arg9: memref<1x32xf32, #tpu.memory_space<vmem>>, %arg10: memref<32x32xbf16, #tpu.memory_space<vmem>>, %arg11: memref<1x32xf32, #tpu.memory_space<vmem>>, %arg12: memref<1x32xf32, #tpu.memory_space<vmem>>, %arg13: memref<1x32xf32, #tpu.memory_space<vmem>>, %arg14: memref<32x128xbf16, #tpu.memory_space<vmem>>, %arg15: memref<1x128xf32, #tpu.memory_space<vmem>>, %arg16: memref<128x32xbf16, #tpu.memory_space<vmem>>, %arg17: memref<1x32xf32, #tpu.memory_space<vmem>>, %arg18: memref<1x8x32xf32, #tpu.memory_space<vmem>>) attributes {dimension_semantics = [#tpu.dimension_semantics<parallel>], iteration_bounds = array<i64: 2>, scalar_prefetch = 0 : i64, scratch_operands = 0 : i64, tpu.core_type = #tpu.core_type<tc>, window_params = [{transform_indices = @transform_0, window_bounds = array<i64: 1, 8, 32>}, {pipeline_mode = #tpu.pipeline_mode<synchronous>, transform_indices = @transform_1, window_bounds = array<i64: 1, 32>}, {pipeline_mode = #tpu.pipeline_mode<synchronous>, transform_indices = @transform_2, window_bounds = array<i64: 1, 32>}, {pipeline_mode = #tpu.pipeline_mode<synchronous>, transform_indices = @transform_3, window_bounds = array<i64: 32, 32>}, {pipeline_mode = #tpu.pipeline_mode<synchronous>, transform_indices = @transform_4, window_bounds = array<i64: 32, 32>}, {pipeline_mode = #tpu.pipeline_mode<synchronous>, transform_indices = @transform_5, window_bounds = array<i64: 32, 32>}, {pipeline_mode = #tpu.pipeline_mode<synchronous>, transform_indices = @transform_6, window_bounds = array<i64: 1, 32>}, {pipeline_mode = #tpu.pipeline_mode<synchronous>, transform_indices = @transform_7, window_bounds = array<i64: 1, 32>}, {pipeline_mode = #tpu.pipeline_mode<synchronous>, transform_indices = @transform_8, window_bounds = array<i64: 1, 32>}, {pipeline_mode = #tpu.pipeline_mode<synchronous>, transform_indices = @transform_9, window_bounds = array<i64: 32, 32>}, {pipeline_mode = #tpu.pipeline_mode<synchronous>, transform_indices = @transform_10, window_bounds = array<i64: 1, 32>}, {pipeline_mode = #tpu.pipeline_mode<synchronous>, transform_indices = @transform_11, window_bounds = array<i64: 1, 32>}, {pipeline_mode = #tpu.pipeline_mode<synchronous>, transform_indices = @transform_12, window_bounds = array<i64: 1, 32>}, {pipeline_mode = #tpu.pipeline_mode<synchronous>, transform_indices = @transform_13, window_bounds = array<i64: 32, 128>}, {pipeline_mode = #tpu.pipeline_mode<synchronous>, transform_indices = @transform_14, window_bounds = array<i64: 1, 128>}, {pipeline_mode = #tpu.pipeline_mode<synchronous>, transform_indices = @transform_15, window_bounds = array<i64: 128, 32>}, {pipeline_mode = #tpu.pipeline_mode<synchronous>, transform_indices = @transform_16, window_bounds = array<i64: 1, 32>}, {transform_indices = @transform_17, window_bounds = array<i64: 1, 8, 32>}]} {
    %c0 = arith.constant 0 : index
    %c0_0 = arith.constant 0 : index
    %c0_1 = arith.constant 0 : index
    %0 = vector.load %arg1[%c0, %c0_0, %c0_1] : memref<1x8x32xf32, #tpu.memory_space<vmem>>, vector<1x8x32xf32>
    %1 = vector.shape_cast %0 : vector<1x8x32xf32> to vector<8x32xf32>
    %c0_2 = arith.constant 0 : index
    %c0_3 = arith.constant 0 : index
    %2 = vector.load %arg2[%c0_2, %c0_3] : memref<1x32xf32, #tpu.memory_space<vmem>>, vector<1x32xf32>
    %c0_4 = arith.constant 0 : index
    %c0_5 = arith.constant 0 : index
    %3 = vector.load %arg3[%c0_4, %c0_5] : memref<1x32xf32, #tpu.memory_space<vmem>>, vector<1x32xf32>
    %cst = arith.constant dense<0.000000e+00> : vector<8xf32>
    %4 = vector.multi_reduction <add>, %1, %cst [1] : vector<8x32xf32> to vector<8xf32>
    %5 = vector.shape_cast %4 : vector<8xf32> to vector<8x1xf32>
    %cst_6 = arith.constant 3.200000e+01 : f32
    %6 = vector.broadcast %cst_6 : f32 to vector<8x1xf32>
    %7 = arith.divf %5, %6 : vector<8x1xf32>
    %8 = vector.broadcast %7 : vector<8x1xf32> to vector<8x32xf32>
    %9 = arith.subf %1, %8 : vector<8x32xf32>
    %10 = arith.mulf %9, %9 : vector<8x32xf32>
    %cst_7 = arith.constant dense<0.000000e+00> : vector<8xf32>
    %11 = vector.multi_reduction <add>, %10, %cst_7 [1] : vector<8x32xf32> to vector<8xf32>
    %12 = vector.shape_cast %11 : vector<8xf32> to vector<8x1xf32>
    %cst_8 = arith.constant 3.200000e+01 : f32
    %13 = vector.broadcast %cst_8 : f32 to vector<8x1xf32>
    %14 = arith.divf %12, %13 : vector<8x1xf32>
    %15 = vector.broadcast %7 : vector<8x1xf32> to vector<8x32xf32>
    %16 = arith.subf %1, %15 : vector<8x32xf32>
    %cst_9 = arith.constant 9.99999974E-6 : f32
    %17 = vector.broadcast %cst_9 : f32 to vector<8x1xf32>
    %18 = arith.addf %14, %17 : vector<8x1xf32>
    %19 = math.rsqrt %18 : vector<8x1xf32>
    %20 = vector.broadcast %19 : vector<8x1xf32> to vector<8x32xf32>
    %21 = arith.mulf %16, %20 : vector<8x32xf32>
    %22 = vector.broadcast %2 : vector<1x32xf32> to vector<8x32xf32>
    %23 = arith.mulf %21, %22 : vector<8x32xf32>
    %24 = vector.broadcast %3 : vector<1x32xf32> to vector<8x32xf32>
    %25 = arith.addf %23, %24 : vector<8x32xf32>
    %26 = arith.truncf %25 : vector<8x32xf32> to vector<8x32xbf16>
    %c0_10 = arith.constant 0 : index
    %c0_11 = arith.constant 0 : index
    %27 = vector.load %arg4[%c0_10, %c0_11] : memref<32x32xbf16, #tpu.memory_space<vmem>>, vector<32x32xbf16>
    %cst_12 = arith.constant dense<0.000000e+00> : vector<8x32xf32>
    %28 = tpu.matmul %26, %27, %cst_12 {dimension_numbers = #tpu.dot_dimension_numbers<[1], [0], [0], [1], [0, 0, 1, 1], [], []>} : vector<8x32xbf16>, vector<32x32xbf16>, vector<8x32xf32> -> vector<8x32xf32>
    %c0_13 = arith.constant 0 : index
    %c0_14 = arith.constant 0 : index
    %29 = vector.load %arg7[%c0_13, %c0_14] : memref<1x32xf32, #tpu.memory_space<vmem>>, vector<1x32xf32>
    %30 = vector.broadcast %29 : vector<1x32xf32> to vector<8x32xf32>
    %31 = arith.addf %28, %30 : vector<8x32xf32>
    %cst_15 = arith.constant 0.353553385 : f32
    %32 = vector.broadcast %cst_15 : f32 to vector<8x32xf32>
    %33 = arith.mulf %31, %32 : vector<8x32xf32>
    %34 = arith.truncf %33 : vector<8x32xf32> to vector<8x32xbf16>
    %c0_16 = arith.constant 0 : index
    %c0_17 = arith.constant 0 : index
    %35 = vector.load %arg5[%c0_16, %c0_17] : memref<32x32xbf16, #tpu.memory_space<vmem>>, vector<32x32xbf16>
    %cst_18 = arith.constant dense<0.000000e+00> : vector<8x32xf32>
    %36 = tpu.matmul %26, %35, %cst_18 {dimension_numbers = #tpu.dot_dimension_numbers<[1], [0], [0], [1], [0, 0, 1, 1], [], []>} : vector<8x32xbf16>, vector<32x32xbf16>, vector<8x32xf32> -> vector<8x32xf32>
    %c0_19 = arith.constant 0 : index
    %c0_20 = arith.constant 0 : index
    %37 = vector.load %arg8[%c0_19, %c0_20] : memref<1x32xf32, #tpu.memory_space<vmem>>, vector<1x32xf32>
    %38 = vector.broadcast %37 : vector<1x32xf32> to vector<8x32xf32>
    %39 = arith.addf %36, %38 : vector<8x32xf32>
    %40 = arith.truncf %39 : vector<8x32xf32> to vector<8x32xbf16>
    %c0_21 = arith.constant 0 : index
    %c0_22 = arith.constant 0 : index
    %41 = vector.load %arg6[%c0_21, %c0_22] : memref<32x32xbf16, #tpu.memory_space<vmem>>, vector<32x32xbf16>
    %cst_23 = arith.constant dense<0.000000e+00> : vector<8x32xf32>
    %42 = tpu.matmul %26, %41, %cst_23 {dimension_numbers = #tpu.dot_dimension_numbers<[1], [0], [0], [1], [0, 0, 1, 1], [], []>} : vector<8x32xbf16>, vector<32x32xbf16>, vector<8x32xf32> -> vector<8x32xf32>
    %c0_24 = arith.constant 0 : index
    %c0_25 = arith.constant 0 : index
    %43 = vector.load %arg9[%c0_24, %c0_25] : memref<1x32xf32, #tpu.memory_space<vmem>>, vector<1x32xf32>
    %44 = vector.broadcast %43 : vector<1x32xf32> to vector<8x32xf32>
    %45 = arith.addf %42, %44 : vector<8x32xf32>
    %46 = arith.truncf %45 : vector<8x32xf32> to vector<8x32xbf16>
    %47 = vector.extract_strided_slice %34 {offsets = [0, 0], sizes = [8, 8], strides = [1, 1]} : vector<8x32xbf16> to vector<8x8xbf16>
    %48 = vector.extract_strided_slice %34 {offsets = [0, 8], sizes = [8, 8], strides = [1, 1]} : vector<8x32xbf16> to vector<8x8xbf16>
    %49 = vector.extract_strided_slice %34 {offsets = [0, 16], sizes = [8, 8], strides = [1, 1]} : vector<8x32xbf16> to vector<8x8xbf16>
    %50 = vector.extract_strided_slice %34 {offsets = [0, 24], sizes = [8, 8], strides = [1, 1]} : vector<8x32xbf16> to vector<8x8xbf16>
    %51 = vector.shape_cast %47 : vector<8x8xbf16> to vector<1x8x8xbf16>
    %52 = vector.shape_cast %48 : vector<8x8xbf16> to vector<1x8x8xbf16>
    %53 = vector.shape_cast %49 : vector<8x8xbf16> to vector<1x8x8xbf16>
    %54 = vector.shape_cast %50 : vector<8x8xbf16> to vector<1x8x8xbf16>
    %55 = tpu.concatenate %51, %52, %53, %54 in 0 : vector<1x8x8xbf16>, vector<1x8x8xbf16>, vector<1x8x8xbf16>, vector<1x8x8xbf16> -> vector<4x8x8xbf16>
    %56 = vector.extract_strided_slice %40 {offsets = [0, 0], sizes = [8, 8], strides = [1, 1]} : vector<8x32xbf16> to vector<8x8xbf16>
    %57 = vector.extract_strided_slice %40 {offsets = [0, 8], sizes = [8, 8], strides = [1, 1]} : vector<8x32xbf16> to vector<8x8xbf16>
    %58 = vector.extract_strided_slice %40 {offsets = [0, 16], sizes = [8, 8], strides = [1, 1]} : vector<8x32xbf16> to vector<8x8xbf16>
    %59 = vector.extract_strided_slice %40 {offsets = [0, 24], sizes = [8, 8], strides = [1, 1]} : vector<8x32xbf16> to vector<8x8xbf16>
    %60 = vector.shape_cast %56 : vector<8x8xbf16> to vector<1x8x8xbf16>
    %61 = vector.shape_cast %57 : vector<8x8xbf16> to vector<1x8x8xbf16>
    %62 = vector.shape_cast %58 : vector<8x8xbf16> to vector<1x8x8xbf16>
    %63 = vector.shape_cast %59 : vector<8x8xbf16> to vector<1x8x8xbf16>
    %64 = tpu.concatenate %60, %61, %62, %63 in 0 : vector<1x8x8xbf16>, vector<1x8x8xbf16>, vector<1x8x8xbf16>, vector<1x8x8xbf16> -> vector<4x8x8xbf16>
    %65 = vector.extract_strided_slice %46 {offsets = [0, 0], sizes = [8, 8], strides = [1, 1]} : vector<8x32xbf16> to vector<8x8xbf16>
    %66 = vector.extract_strided_slice %46 {offsets = [0, 8], sizes = [8, 8], strides = [1, 1]} : vector<8x32xbf16> to vector<8x8xbf16>
    %67 = vector.extract_strided_slice %46 {offsets = [0, 16], sizes = [8, 8], strides = [1, 1]} : vector<8x32xbf16> to vector<8x8xbf16>
    %68 = vector.extract_strided_slice %46 {offsets = [0, 24], sizes = [8, 8], strides = [1, 1]} : vector<8x32xbf16> to vector<8x8xbf16>
    %69 = vector.shape_cast %65 : vector<8x8xbf16> to vector<1x8x8xbf16>
    %70 = vector.shape_cast %66 : vector<8x8xbf16> to vector<1x8x8xbf16>
    %71 = vector.shape_cast %67 : vector<8x8xbf16> to vector<1x8x8xbf16>
    %72 = vector.shape_cast %68 : vector<8x8xbf16> to vector<1x8x8xbf16>
    %73 = tpu.concatenate %69, %70, %71, %72 in 0 : vector<1x8x8xbf16>, vector<1x8x8xbf16>, vector<1x8x8xbf16>, vector<1x8x8xbf16> -> vector<4x8x8xbf16>
    "tpu.trace_start"() <{level = 10 : i32, message = "hqd,hkd->hqk"}> : () -> ()
    %cst_26 = arith.constant dense<0.000000e+00> : vector<4x8x8xf32>
    %74 = tpu.matmul %55, %64, %cst_26 {dimension_numbers = #tpu.dot_dimension_numbers<[2], [2], [1], [1], [0, 0, 0, 1, 1, 1], [0], [0]>} : vector<4x8x8xbf16>, vector<4x8x8xbf16>, vector<4x8x8xf32> -> vector<4x8x8xf32>
    "tpu.trace_stop"() : () -> ()
    %cst_27 = arith.constant dense<0xFF800000> : vector<4x8xf32>
    %75 = vector.multi_reduction <maximumf>, %74, %cst_27 [2] : vector<4x8x8xf32> to vector<4x8xf32>
    %76 = vector.shape_cast %75 : vector<4x8xf32> to vector<4x8x1xf32>
    %77 = vector.broadcast %76 : vector<4x8x1xf32> to vector<4x8x8xf32>
    %78 = arith.subf %74, %77 : vector<4x8x8xf32>
    %79 = math.exp %78 : vector<4x8x8xf32>
    %cst_28 = arith.constant dense<0.000000e+00> : vector<4x8xf32>
    %80 = vector.multi_reduction <add>, %79, %cst_28 [2] : vector<4x8x8xf32> to vector<4x8xf32>
    %81 = vector.shape_cast %80 : vector<4x8xf32> to vector<4x8x1xf32>
    %82 = tpu.reciprocal %81 {approx = true} : vector<4x8x1xf32> -> vector<4x8x1xf32>
    %83 = vector.broadcast %82 : vector<4x8x1xf32> to vector<4x8x8xf32>
    %84 = arith.mulf %79, %83 : vector<4x8x8xf32>
    %85 = arith.truncf %84 : vector<4x8x8xf32> to vector<4x8x8xbf16>
    "tpu.trace_start"() <{level = 10 : i32, message = "hqk,hkd->hqd"}> : () -> ()
    %cst_29 = arith.constant dense<0.000000e+00> : vector<4x8x8xf32>
    %86 = tpu.matmul %85, %73, %cst_29 {dimension_numbers = #tpu.dot_dimension_numbers<[2], [1], [1], [2], [0, 0, 0, 1, 1, 2], [0], [0]>} : vector<4x8x8xbf16>, vector<4x8x8xbf16>, vector<4x8x8xf32> -> vector<4x8x8xf32>
    "tpu.trace_stop"() : () -> ()
    %87 = vector.extract_strided_slice %86 {offsets = [0, 0, 0], sizes = [1, 8, 8], strides = [1, 1, 1]} : vector<4x8x8xf32> to vector<1x8x8xf32>
    %88 = vector.shape_cast %87 : vector<1x8x8xf32> to vector<8x8xf32>
    %89 = vector.extract_strided_slice %86 {offsets = [1, 0, 0], sizes = [1, 8, 8], strides = [1, 1, 1]} : vector<4x8x8xf32> to vector<1x8x8xf32>
    %90 = vector.shape_cast %89 : vector<1x8x8xf32> to vector<8x8xf32>
    %91 = vector.extract_strided_slice %86 {offsets = [2, 0, 0], sizes = [1, 8, 8], strides = [1, 1, 1]} : vector<4x8x8xf32> to vector<1x8x8xf32>
    %92 = vector.shape_cast %91 : vector<1x8x8xf32> to vector<8x8xf32>
    %93 = vector.extract_strided_slice %86 {offsets = [3, 0, 0], sizes = [1, 8, 8], strides = [1, 1, 1]} : vector<4x8x8xf32> to vector<1x8x8xf32>
    %94 = vector.shape_cast %93 : vector<1x8x8xf32> to vector<8x8xf32>
    %95 = tpu.concatenate %88, %90, %92, %94 in 1 : vector<8x8xf32>, vector<8x8xf32>, vector<8x8xf32>, vector<8x8xf32> -> vector<8x32xf32>
    %96 = arith.truncf %95 : vector<8x32xf32> to vector<8x32xbf16>
    %c0_30 = arith.constant 0 : index
    %c0_31 = arith.constant 0 : index
    %97 = vector.load %arg10[%c0_30, %c0_31] : memref<32x32xbf16, #tpu.memory_space<vmem>>, vector<32x32xbf16>
    %cst_32 = arith.constant dense<0.000000e+00> : vector<8x32xf32>
    %98 = tpu.matmul %96, %97, %cst_32 {dimension_numbers = #tpu.dot_dimension_numbers<[1], [0], [0], [1], [0, 0, 1, 1], [], []>} : vector<8x32xbf16>, vector<32x32xbf16>, vector<8x32xf32> -> vector<8x32xf32>
    %c0_33 = arith.constant 0 : index
    %c0_34 = arith.constant 0 : index
    %99 = vector.load %arg11[%c0_33, %c0_34] : memref<1x32xf32, #tpu.memory_space<vmem>>, vector<1x32xf32>
    %100 = vector.broadcast %99 : vector<1x32xf32> to vector<8x32xf32>
    %101 = arith.addf %98, %100 : vector<8x32xf32>
    %102 = arith.addf %1, %101 : vector<8x32xf32>
    %c0_35 = arith.constant 0 : index
    %c0_36 = arith.constant 0 : index
    %103 = vector.load %arg12[%c0_35, %c0_36] : memref<1x32xf32, #tpu.memory_space<vmem>>, vector<1x32xf32>
    %c0_37 = arith.constant 0 : index
    %c0_38 = arith.constant 0 : index
    %104 = vector.load %arg13[%c0_37, %c0_38] : memref<1x32xf32, #tpu.memory_space<vmem>>, vector<1x32xf32>
    %cst_39 = arith.constant dense<0.000000e+00> : vector<8xf32>
    %105 = vector.multi_reduction <add>, %102, %cst_39 [1] : vector<8x32xf32> to vector<8xf32>
    %106 = vector.shape_cast %105 : vector<8xf32> to vector<8x1xf32>
    %cst_40 = arith.constant 3.200000e+01 : f32
    %107 = vector.broadcast %cst_40 : f32 to vector<8x1xf32>
    %108 = arith.divf %106, %107 : vector<8x1xf32>
    %109 = vector.broadcast %108 : vector<8x1xf32> to vector<8x32xf32>
    %110 = arith.subf %102, %109 : vector<8x32xf32>
    %111 = arith.mulf %110, %110 : vector<8x32xf32>
    %cst_41 = arith.constant dense<0.000000e+00> : vector<8xf32>
    %112 = vector.multi_reduction <add>, %111, %cst_41 [1] : vector<8x32xf32> to vector<8xf32>
    %113 = vector.shape_cast %112 : vector<8xf32> to vector<8x1xf32>
    %cst_42 = arith.constant 3.200000e+01 : f32
    %114 = vector.broadcast %cst_42 : f32 to vector<8x1xf32>
    %115 = arith.divf %113, %114 : vector<8x1xf32>
    %116 = vector.broadcast %108 : vector<8x1xf32> to vector<8x32xf32>
    %117 = arith.subf %102, %116 : vector<8x32xf32>
    %cst_43 = arith.constant 9.99999974E-6 : f32
    %118 = vector.broadcast %cst_43 : f32 to vector<8x1xf32>
    %119 = arith.addf %115, %118 : vector<8x1xf32>
    %120 = math.rsqrt %119 : vector<8x1xf32>
    %121 = vector.broadcast %120 : vector<8x1xf32> to vector<8x32xf32>
    %122 = arith.mulf %117, %121 : vector<8x32xf32>
    %123 = vector.broadcast %103 : vector<1x32xf32> to vector<8x32xf32>
    %124 = arith.mulf %122, %123 : vector<8x32xf32>
    %125 = vector.broadcast %104 : vector<1x32xf32> to vector<8x32xf32>
    %126 = arith.addf %124, %125 : vector<8x32xf32>
    %127 = arith.truncf %126 : vector<8x32xf32> to vector<8x32xbf16>
    %c0_44 = arith.constant 0 : index
    %c0_45 = arith.constant 0 : index
    %128 = vector.load %arg14[%c0_44, %c0_45] : memref<32x128xbf16, #tpu.memory_space<vmem>>, vector<32x128xbf16>
    %cst_46 = arith.constant dense<0.000000e+00> : vector<8x128xf32>
    %129 = tpu.matmul %127, %128, %cst_46 {dimension_numbers = #tpu.dot_dimension_numbers<[1], [0], [0], [1], [0, 0, 1, 1], [], []>} : vector<8x32xbf16>, vector<32x128xbf16>, vector<8x128xf32> -> vector<8x128xf32>
    %c0_47 = arith.constant 0 : index
    %c0_48 = arith.constant 0 : index
    %130 = vector.load %arg15[%c0_47, %c0_48] : memref<1x128xf32, #tpu.memory_space<vmem>>, vector<1x128xf32>
    %131 = vector.broadcast %130 : vector<1x128xf32> to vector<8x128xf32>
    %132 = arith.addf %129, %131 : vector<8x128xf32>
    %cst_49 = arith.constant 0.000000e+00 : f32
    %133 = vector.broadcast %cst_49 : f32 to vector<8x128xf32>
    %134 = arith.maximumf %132, %133 : vector<8x128xf32>
    %135 = arith.truncf %134 : vector<8x128xf32> to vector<8x128xbf16>
    %c0_50 = arith.constant 0 : index
    %c0_51 = arith.constant 0 : index
    %136 = vector.load %arg16[%c0_50, %c0_51] : memref<128x32xbf16, #tpu.memory_space<vmem>>, vector<128x32xbf16>
    %cst_52 = arith.constant dense<0.000000e+00> : vector<8x32xf32>
    %137 = tpu.matmul %135, %136, %cst_52 {dimension_numbers = #tpu.dot_dimension_numbers<[1], [0], [0], [1], [0, 0, 1, 1], [], []>} : vector<8x128xbf16>, vector<128x32xbf16>, vector<8x32xf32> -> vector<8x32xf32>
    %c0_53 = arith.constant 0 : index
    %c0_54 = arith.constant 0 : index
    %138 = vector.load %arg17[%c0_53, %c0_54] : memref<1x32xf32, #tpu.memory_space<vmem>>, vector<1x32xf32>
    %139 = vector.broadcast %138 : vector<1x32xf32> to vector<8x32xf32>
    %140 = arith.addf %137, %139 : vector<8x32xf32>
    %141 = arith.addf %102, %140 : vector<8x32xf32>
    %c0_55 = arith.constant 0 : index
    %c0_56 = arith.constant 0 : index
    %c0_57 = arith.constant 0 : index
    %142 = vector.load %arg18[%c0_55, %c0_56, %c0_57] : memref<1x8x32xf32, #tpu.memory_space<vmem>>, vector<1x8x32xf32>
    %143 = vector.shape_cast %142 : vector<1x8x32xf32> to vector<8x32xf32>
    %144 = vector.shape_cast %141 : vector<8x32xf32> to vector<1x8x32xf32>
    tpu.vector_store %arg18[%c0_55, %c0_56, %c0_57], %144 {strides = array<i32>} : memref<1x8x32xf32, #tpu.memory_space<vmem>>, vector<1x8x32xf32>,
    return
  }
  func.func @transform_0(%arg0: i32) -> (i32, i32, i32) {
    %c0_i32 = arith.constant 0 : i32
    %c0_i32_0 = arith.constant 0 : i32
    %c0_i32_1 = arith.constant 0 : i32
    return %arg0, %c0_i32, %c0_i32_0 : i32, i32, i32
  }
  func.func @transform_1(%arg0: i32) -> (i32, i32) {
    %c0_i32 = arith.constant 0 : i32
    %c0_i32_0 = arith.constant 0 : i32
    %c0_i32_1 = arith.constant 0 : i32
    return %c0_i32, %c0_i32_0 : i32, i32
  }
  func.func @transform_2(%arg0: i32) -> (i32, i32) {
    %c0_i32 = arith.constant 0 : i32
    %c0_i32_0 = arith.constant 0 : i32
    %c0_i32_1 = arith.constant 0 : i32
    return %c0_i32, %c0_i32_0 : i32, i32
  }
  func.func @transform_3(%arg0: i32) -> (i32, i32) {
    %c0_i32 = arith.constant 0 : i32
    %c0_i32_0 = arith.constant 0 : i32
    %c0_i32_1 = arith.constant 0 : i32
    return %c0_i32, %c0_i32_0 : i32, i32
  }
  func.func @transform_4(%arg0: i32) -> (i32, i32) {
    %c0_i32 = arith.constant 0 : i32
    %c0_i32_0 = arith.constant 0 : i32
    %c0_i32_1 = arith.constant 0 : i32
    return %c0_i32, %c0_i32_0 : i32, i32
  }
  func.func @transform_5(%arg0: i32) -> (i32, i32) {
    %c0_i32 = arith.constant 0 : i32
    %c0_i32_0 = arith.constant 0 : i32
    %c0_i32_1 = arith.constant 0 : i32
    return %c0_i32, %c0_i32_0 : i32, i32
  }
  func.func @transform_6(%arg0: i32) -> (i32, i32) {
    %c0_i32 = arith.constant 0 : i32
    %c0_i32_0 = arith.constant 0 : i32
    %c0_i32_1 = arith.constant 0 : i32
    return %c0_i32, %c0_i32_0 : i32, i32
  }
  func.func @transform_7(%arg0: i32) -> (i32, i32) {
    %c0_i32 = arith.constant 0 : i32
    %c0_i32_0 = arith.constant 0 : i32
    %c0_i32_1 = arith.constant 0 : i32
    return %c0_i32, %c0_i32_0 : i32, i32
  }
  func.func @transform_8(%arg0: i32) -> (i32, i32) {
    %c0_i32 = arith.constant 0 : i32
    %c0_i32_0 = arith.constant 0 : i32
    %c0_i32_1 = arith.constant 0 : i32
    return %c0_i32, %c0_i32_0 : i32, i32
  }
  func.func @transform_9(%arg0: i32) -> (i32, i32) {
    %c0_i32 = arith.constant 0 : i32
    %c0_i32_0 = arith.constant 0 : i32
    %c0_i32_1 = arith.constant 0 : i32
    return %c0_i32, %c0_i32_0 : i32, i32
  }
  func.func @transform_10(%arg0: i32) -> (i32, i32) {
    %c0_i32 = arith.constant 0 : i32
    %c0_i32_0 = arith.constant 0 : i32
    %c0_i32_1 = arith.constant 0 : i32
    return %c0_i32, %c0_i32_0 : i32, i32
  }
  func.func @transform_11(%arg0: i32) -> (i32, i32) {
    %c0_i32 = arith.constant 0 : i32
    %c0_i32_0 = arith.constant 0 : i32
    %c0_i32_1 = arith.constant 0 : i32
    return %c0_i32, %c0_i32_0 : i32, i32
  }
  func.func @transform_12(%arg0: i32) -> (i32, i32) {
    %c0_i32 = arith.constant 0 : i32
    %c0_i32_0 = arith.constant 0 : i32
    %c0_i32_1 = arith.constant 0 : i32
    return %c0_i32, %c0_i32_0 : i32, i32
  }
  func.func @transform_13(%arg0: i32) -> (i32, i32) {
    %c0_i32 = arith.constant 0 : i32
    %c0_i32_0 = arith.constant 0 : i32
    %c0_i32_1 = arith.constant 0 : i32
    return %c0_i32, %c0_i32_0 : i32, i32
  }
  func.func @transform_14(%arg0: i32) -> (i32, i32) {
    %c0_i32 = arith.constant 0 : i32
    %c0_i32_0 = arith.constant 0 : i32
    %c0_i32_1 = arith.constant 0 : i32
    return %c0_i32, %c0_i32_0 : i32, i32
  }
  func.func @transform_15(%arg0: i32) -> (i32, i32) {
    %c0_i32 = arith.constant 0 : i32
    %c0_i32_0 = arith.constant 0 : i32
    %c0_i32_1 = arith.constant 0 : i32
    return %c0_i32, %c0_i32_0 : i32, i32
  }
  func.func @transform_16(%arg0: i32) -> (i32, i32) {
    %c0_i32 = arith.constant 0 : i32
    %c0_i32_0 = arith.constant 0 : i32
    %c0_i32_1 = arith.constant 0 : i32
    return %c0_i32, %c0_i32_0 : i32, i32
  }
  func.func @transform_17(%arg0: i32) -> (i32, i32, i32) {
    %c0_i32 = arith.constant 0 : i32
    %c0_i32_0 = arith.constant 0 : i32
    %c0_i32_1 = arith.constant 0 : i32
    return %arg0, %c0_i32, %c0_i32_0 : i32, i32, i32
  }
}

</mosaic_0001>

<llo_original>
// kernel: csfp_forward.8
$region0: #{csfp_forward.8}
  #allocation0 [shape = 'u32[]', space=smem, size = 0x4, offset = 0x4, fixed_abs, tag = 'smem constant byte address 0x4 - core index']
  #allocation1 [shape = 'u32[144,128]{1,0:T(1,128)}', space=vmem, size = 0x12000, scoped, tag = 'internal scratch']
  %s0 = inlined_call_operand.vmem [shape: f32[2,8,32], index: 0, kind: input, shape index: {}]
  %s1 = inlined_call_operand.vmem [shape: f32[1,32], index: 1, kind: input, shape index: {}]
  %s2 = inlined_call_operand.vmem [shape: f32[1,32], index: 2, kind: input, shape index: {}]
  %s3 = inlined_call_operand.vmem [shape: bf16[32,32], index: 3, kind: input, shape index: {}]
  %s4 = inlined_call_operand.vmem [shape: bf16[32,32], index: 4, kind: input, shape index: {}]
  %s5 = inlined_call_operand.vmem [shape: bf16[32,32], index: 5, kind: input, shape index: {}]
  %s6 = inlined_call_operand.vmem [shape: f32[1,32], index: 6, kind: input, shape index: {}]
  %s7 = inlined_call_operand.vmem [shape: f32[1,32], index: 7, kind: input, shape index: {}]
  %s8 = inlined_call_operand.vmem [shape: f32[1,32], index: 8, kind: input, shape index: {}]
  %s9 = inlined_call_operand.vmem [shape: bf16[32,32], index: 9, kind: input, shape index: {}]
  %s10 = inlined_call_operand.vmem [shape: f32[1,32], index: 10, kind: input, shape index: {}]
  %s11 = inlined_call_operand.vmem [shape: f32[1,32], index: 11, kind: input, shape index: {}]
  %s12 = inlined_call_operand.vmem [shape: f32[1,32], index: 12, kind: input, shape index: {}]
  %s13 = inlined_call_operand.vmem [shape: bf16[32,128], index: 13, kind: input, shape index: {}]
  %s14 = inlined_call_operand.vmem [shape: f32[1,128], index: 14, kind: input, shape index: {}]
  %s15 = inlined_call_operand.vmem [shape: bf16[128,32], index: 15, kind: input, shape index: {}]
  %s16 = inlined_call_operand.vmem [shape: f32[1,32], index: 16, kind: input, shape index: {}]
  %s17 = inlined_call_operand.vmem [shape: f32[2,8,32], index: 17, kind: output, shape index: {}]
  %s18 = sld [smem:[#allocation0]]
  $region101: #{csfp_forward.8} parent=0
    _
  %s20 = ssub.s32 1, %s18
  %s21 = scalar_select 0, %s20, %s18
  loop: start=0, step=1, limit=4
  $region2: #{csfp_forward.8} parent=0 // loop_pre_header
    _
  $region3: #{csfp_forward.8} parent=0 // loop_header
    %s23 = sphi 0, %s27
    %p24 = scmp.ge.s32.totalorder %s23, 4
    %s33 = sphi 0, %s35
    %s36 = sphi 0, %s33
    %s37 = sphi 0, %s36
    %s53 = sphi 0, %s37
    %s57 = sphi 0, %s57
    %s59 = sphi 0, %s57
    %s60 = sphi 0, %s59
    %s74 = sphi 0, %s60
    %s78 = sphi 0, %s78
    %s80 = sphi 0, %s78
    %s81 = sphi 0, %s80
    %s95 = sphi 0, %s81
    %s99 = sphi 0, %s99
    %s101 = sphi 0, %s99
    %s102 = sphi 0, %s101
    %s116 = sphi 0, %s102
    %s120 = sphi 0, %s120
    %s122 = sphi 0, %s120
    %s123 = sphi 0, %s122
    %s137 = sphi 0, %s123
    %s141 = sphi 0, %s141
    %s143 = sphi 0, %s141
    %s144 = sphi 0, %s143
    %s158 = sphi 0, %s144
    %s162 = sphi 0, %s162
    %s164 = sphi 0, %s162
    %s165 = sphi 0, %s164
    %s179 = sphi 0, %s165
    %s183 = sphi 0, %s183
    %s185 = sphi 0, %s183
    %s186 = sphi 0, %s185
    %s200 = sphi 0, %s186
    %s204 = sphi 0, %s204
    %s206 = sphi 0, %s204
    %s207 = sphi 0, %s206
    %s221 = sphi 0, %s207
    %s225 = sphi 0, %s225
    %s227 = sphi 0, %s225
    %s228 = sphi 0, %s227
    %s242 = sphi 0, %s228
    %s246 = sphi 0, %s246
    %s248 = sphi 0, %s246
    %s249 = sphi 0, %s248
    %s263 = sphi 0, %s249
    %s267 = sphi 0, %s267
    %s269 = sphi 0, %s267
    %s270 = sphi 0, %s269
    %s284 = sphi 0, %s270
    %s288 = sphi 0, %s288
    %s290 = sphi 0, %s288
    %s291 = sphi 0, %s290
    %s305 = sphi 0, %s291
    %s309 = sphi 0, %s309
    %s311 = sphi 0, %s309
    %s312 = sphi 0, %s311
    %s326 = sphi 0, %s312
    %s330 = sphi 0, %s330
    %s332 = sphi 0, %s330
    %s333 = sphi 0, %s332
    %s347 = sphi 0, %s333
    %s351 = sphi 0, %s351
    %s353 = sphi 0, %s351
    %s354 = sphi 0, %s353
    %s368 = sphi 0, %s354
    %s372 = sphi 0, %s372
    %s374 = sphi 0, %s372
    %s375 = sphi 0, %s374
    %s389 = sphi 0, %s375
    %s395 = sphi 0, %s397
    %s398 = sphi 0, %s395
    %s399 = sphi 0, %s398
    %s415 = sphi 0, %s399
  $region4: #{csfp_forward.8} parent=0 // loop_header_branch
    %26 = sbr.rel (%p24) target = $region8
  $region5: #{csfp_forward.8} parent=0 // loop_body
    %s28 = ssub.s32 %s23, 1
    %s29 = ssub.s32 %s23, 2
    %s30 = sadd.s32 %s23, 1
    %s31 = ssub.s32 %s23, %s30
    %p32 = scmp.eq.s32.totalorder %s31, 0
    %s34 = sadd.s32 %s33, 1
    %s35 = scalar_select %p32, %s33, %s34
    %p38 = pneg %p32
    %p39 = scmp.eq.s32.totalorder %s23, 1
    %p40 = por %p38, %p39
    %p41 = scmp.ne.s32.totalorder %s33, %s36
    %p42 = scmp.eq.s32.totalorder %s23, 0
    %p43 = por %p41, %p42
    %p44 = scmp.ne.s32.totalorder %s33, %s36
    %p45 = scmp.eq.s32.totalorder %s28, 1
    %p46 = por %p44, %p45
    %p47 = scmp.ne.s32.totalorder %s36, %s37
    %p48 = scmp.eq.s32.totalorder %s28, 0
    %p49 = por %p47, %p48
    %p50 = scmp.ne.s32.totalorder %s36, %s37
    %p51 = scmp.eq.s32.totalorder %s29, 1
    %p52 = por %p50, %p51
    %p54 = scmp.ne.s32.totalorder %s37, %s53
    %p55 = scmp.eq.s32.totalorder %s29, 0
    %p56 = por %p54, %p55
    %s58 = sadd.s32 %s57, 1
    %p61 = scmp.eq.s32.totalorder %s23, 1
    %p62 = scmp.ne.s32.totalorder %s57, %s59
    %p63 = scmp.eq.s32.totalorder %s23, 0
    %p64 = por %p62, %p63
    %p65 = scmp.ne.s32.totalorder %s57, %s59
    %p66 = scmp.eq.s32.totalorder %s28, 1
    %p67 = por %p65, %p66
    %p68 = scmp.ne.s32.totalorder %s59, %s60
    %p69 = scmp.eq.s32.totalorder %s28, 0
    %p70 = por %p68, %p69
    %p71 = scmp.ne.s32.totalorder %s59, %s60
    %p72 = scmp.eq.s32.totalorder %s29, 1
    %p73 = por %p71, %p72
    %p75 = scmp.ne.s32.totalorder %s60, %s74
    %p76 = scmp.eq.s32.totalorder %s29, 0
    %p77 = por %p75, %p76
    %s79 = sadd.s32 %s78, 1
    %p82 = scmp.eq.s32.totalorder %s23, 1
    %p83 = scmp.ne.s32.totalorder %s78, %s80
    %p84 = scmp.eq.s32.totalorder %s23, 0
    %p85 = por %p83, %p84
    %p86 = scmp.ne.s32.totalorder %s78, %s80
    %p87 = scmp.eq.s32.totalorder %s28, 1
    %p88 = por %p86, %p87
    %p89 = scmp.ne.s32.totalorder %s80, %s81
    %p90 = scmp.eq.s32.totalorder %s28, 0
    %p91 = por %p89, %p90
    %p92 = scmp.ne.s32.totalorder %s80, %s81
    %p93 = scmp.eq.s32.totalorder %s29, 1
    %p94 = por %p92, %p93
    %p96 = scmp.ne.s32.totalorder %s81, %s95
    %p97 = scmp.eq.s32.totalorder %s29, 0
    %p98 = por %p96, %p97
    %s100 = sadd.s32 %s99, 1
    %p103 = scmp.eq.s32.totalorder %s23, 1
    %p104 = scmp.ne.s32.totalorder %s99, %s101
    %p105 = scmp.eq.s32.totalorder %s23, 0
    %p106 = por %p104, %p105
    %p107 = scmp.ne.s32.totalorder %s99, %s101
    %p108 = scmp.eq.s32.totalorder %s28, 1
    %p109 = por %p107, %p108
    %p110 = scmp.ne.s32.totalorder %s101, %s102
    %p111 = scmp.eq.s32.totalorder %s28, 0
    %p112 = por %p110, %p111
    %p113 = scmp.ne.s32.totalorder %s101, %s102
    %p114 = scmp.eq.s32.totalorder %s29, 1
    %p115 = por %p113, %p114
    %p117 = scmp.ne.s32.totalorder %s102, %s116
    %p118 = scmp.eq.s32.totalorder %s29, 0
    %p119 = por %p117, %p118
    %s121 = sadd.s32 %s120, 1
    %p124 = scmp.eq.s32.totalorder %s23, 1
    %p125 = scmp.ne.s32.totalorder %s120, %s122
    %p126 = scmp.eq.s32.totalorder %s23, 0
    %p127 = por %p125, %p126
    %p128 = scmp.ne.s32.totalorder %s120, %s122
    %p129 = scmp.eq.s32.totalorder %s28, 1
    %p130 = por %p128, %p129
    %p131 = scmp.ne.s32.totalorder %s122, %s123
    %p132 = scmp.eq.s32.totalorder %s28, 0
    %p133 = por %p131, %p132
    %p134 = scmp.ne.s32.totalorder %s122, %s123
    %p135 = scmp.eq.s32.totalorder %s29, 1
    %p136 = por %p134, %p135
    %p138 = scmp.ne.s32.totalorder %s123, %s137
    %p139 = scmp.eq.s32.totalorder %s29, 0
    %p140 = por %p138, %p139
    %s142 = sadd.s32 %s141, 1
    %p145 = scmp.eq.s32.totalorder %s23, 1
    %p146 = scmp.ne.s32.totalorder %s141, %s143
    %p147 = scmp.eq.s32.totalorder %s23, 0
    %p148 = por %p146, %p147
    %p149 = scmp.ne.s32.totalorder %s141, %s143
    %p150 = scmp.eq.s32.totalorder %s28, 1
    %p151 = por %p149, %p150
    %p152 = scmp.ne.s32.totalorder %s143, %s144
    %p153 = scmp.eq.s32.totalorder %s28, 0
    %p154 = por %p152, %p153
    %p155 = scmp.ne.s32.totalorder %s143, %s144
    %p156 = scmp.eq.s32.totalorder %s29, 1
    %p157 = por %p155, %p156
    %p159 = scmp.ne.s32.totalorder %s144, %s158
    %p160 = scmp.eq.s32.totalorder %s29, 0
    %p161 = por %p159, %p160
    %s163 = sadd.s32 %s162, 1
    %p166 = scmp.eq.s32.totalorder %s23, 1
    %p167 = scmp.ne.s32.totalorder %s162, %s164
    %p168 = scmp.eq.s32.totalorder %s23, 0
    %p169 = por %p167, %p168
    %p170 = scmp.ne.s32.totalorder %s162, %s164
    %p171 = scmp.eq.s32.totalorder %s28, 1
    %p172 = por %p170, %p171
    %p173 = scmp.ne.s32.totalorder %s164, %s165
    %p174 = scmp.eq.s32.totalorder %s28, 0
    %p175 = por %p173, %p174
    %p176 = scmp.ne.s32.totalorder %s164, %s165
    %p177 = scmp.eq.s32.totalorder %s29, 1
    %p178 = por %p176, %p177
    %p180 = scmp.ne.s32.totalorder %s165, %s179
    %p181 = scmp.eq.s32.totalorder %s29, 0
    %p182 = por %p180, %p181
    %s184 = sadd.s32 %s183, 1
    %p187 = scmp.eq.s32.totalorder %s23, 1
    %p188 = scmp.ne.s32.totalorder %s183, %s185
    %p189 = scmp.eq.s32.totalorder %s23, 0
    %p190 = por %p188, %p189
    %p191 = scmp.ne.s32.totalorder %s183, %s185
    %p192 = scmp.eq.s32.totalorder %s28, 1
    %p193 = por %p191, %p192
    %p194 = scmp.ne.s32.totalorder %s185, %s186
    %p195 = scmp.eq.s32.totalorder %s28, 0
    %p196 = por %p194, %p195
    %p197 = scmp.ne.s32.totalorder %s185, %s186
    %p198 = scmp.eq.s32.totalorder %s29, 1
    %p199 = por %p197, %p198
    %p201 = scmp.ne.s32.totalorder %s186, %s200
    %p202 = scmp.eq.s32.totalorder %s29, 0
    %p203 = por %p201, %p202
    %s205 = sadd.s32 %s204, 1
    %p208 = scmp.eq.s32.totalorder %s23, 1
    %p209 = scmp.ne.s32.totalorder %s204, %s206
    %p210 = scmp.eq.s32.totalorder %s23, 0
    %p211 = por %p209, %p210
    %p212 = scmp.ne.s32.totalorder %s204, %s206
    %p213 = scmp.eq.s32.totalorder %s28, 1
    %p214 = por %p212, %p213
    %p215 = scmp.ne.s32.totalorder %s206, %s207
    %p216 = scmp.eq.s32.totalorder %s28, 0
    %p217 = por %p215, %p216
    %p218 = scmp.ne.s32.totalorder %s206, %s207
    %p219 = scmp.eq.s32.totalorder %s29, 1
    %p220 = por %p218, %p219
    %p222 = scmp.ne.s32.totalorder %s207, %s221
    %p223 = scmp.eq.s32.totalorder %s29, 0
    %p224 = por %p222, %p223
    %s226 = sadd.s32 %s225, 1
    %p229 = scmp.eq.s32.totalorder %s23, 1
    %p230 = scmp.ne.s32.totalorder %s225, %s227
    %p231 = scmp.eq.s32.totalorder %s23, 0
    %p232 = por %p230, %p231
    %p233 = scmp.ne.s32.totalorder %s225, %s227
    %p234 = scmp.eq.s32.totalorder %s28, 1
    %p235 = por %p233, %p234
    %p236 = scmp.ne.s32.totalorder %s227, %s228
    %p237 = scmp.eq.s32.totalorder %s28, 0
    %p238 = por %p236, %p237
    %p239 = scmp.ne.s32.totalorder %s227, %s228
    %p240 = scmp.eq.s32.totalorder %s29, 1
    %p241 = por %p239, %p240
    %p243 = scmp.ne.s32.totalorder %s228, %s242
    %p244 = scmp.eq.s32.totalorder %s29, 0
    %p245 = por %p243, %p244
    %s247 = sadd.s32 %s246, 1
    %p250 = scmp.eq.s32.totalorder %s23, 1
    %p251 = scmp.ne.s32.totalorder %s246, %s248
    %p252 = scmp.eq.s32.totalorder %s23, 0
    %p253 = por %p251, %p252
    %p254 = scmp.ne.s32.totalorder %s246, %s248
    %p255 = scmp.eq.s32.totalorder %s28, 1
    %p256 = por %p254, %p255
    %p257 = scmp.ne.s32.totalorder %s248, %s249
    %p258 = scmp.eq.s32.totalorder %s28, 0
    %p259 = por %p257, %p258
    %p260 = scmp.ne.s32.totalorder %s248, %s249
    %p261 = scmp.eq.s32.totalorder %s29, 1
    %p262 = por %p260, %p261
    %p264 = scmp.ne.s32.totalorder %s249, %s263
    %p265 = scmp.eq.s32.totalorder %s29, 0
    %p266 = por %p264, %p265
    %s268 = sadd.s32 %s267, 1
    %p271 = scmp.eq.s32.totalorder %s23, 1
    %p272 = scmp.ne.s32.totalorder %s267, %s269
    %p273 = scmp.eq.s32.totalorder %s23, 0
    %p274 = por %p272, %p273
    %p275 = scmp.ne.s32.totalorder %s267, %s269
    %p276 = scmp.eq.s32.totalorder %s28, 1
    %p277 = por %p275, %p276
    %p278 = scmp.ne.s32.totalorder %s269, %s270
    %p279 = scmp.eq.s32.totalorder %s28, 0
    %p280 = por %p278, %p279
    %p281 = scmp.ne.s32.totalorder %s269, %s270
    %p282 = scmp.eq.s32.totalorder %s29, 1
    %p283 = por %p281, %p282
    %p285 = scmp.ne.s32.totalorder %s270, %s284
    %p286 = scmp.eq.s32.totalorder %s29, 0
    %p287 = por %p285, %p286
    %s289 = sadd.s32 %s288, 1
    %p292 = scmp.eq.s32.totalorder %s23, 1
    %p293 = scmp.ne.s32.totalorder %s288, %s290
    %p294 = scmp.eq.s32.totalorder %s23, 0
    %p295 = por %p293, %p294
    %p296 = scmp.ne.s32.totalorder %s288, %s290
    %p297 = scmp.eq.s32.totalorder %s28, 1
    %p298 = por %p296, %p297
    %p299 = scmp.ne.s32.totalorder %s290, %s291
    %p300 = scmp.eq.s32.totalorder %s28, 0
    %p301 = por %p299, %p300
    %p302 = scmp.ne.s32.totalorder %s290, %s291
    %p303 = scmp.eq.s32.totalorder %s29, 1
    %p304 = por %p302, %p303
    %p306 = scmp.ne.s32.totalorder %s291, %s305
    %p307 = scmp.eq.s32.totalorder %s29, 0
    %p308 = por %p306, %p307
    %s310 = sadd.s32 %s309, 1
    %p313 = scmp.eq.s32.totalorder %s23, 1
    %p314 = scmp.ne.s32.totalorder %s309, %s311
    %p315 = scmp.eq.s32.totalorder %s23, 0
    %p316 = por %p314, %p315
    %p317 = scmp.ne.s32.totalorder %s309, %s311
    %p318 = scmp.eq.s32.totalorder %s28, 1
    %p319 = por %p317, %p318
    %p320 = scmp.ne.s32.totalorder %s311, %s312
    %p321 = scmp.eq.s32.totalorder %s28, 0
    %p322 = por %p320, %p321
    %p323 = scmp.ne.s32.totalorder %s311, %s312
    %p324 = scmp.eq.s32.totalorder %s29, 1
    %p325 = por %p323, %p324
    %p327 = scmp.ne.s32.totalorder %s312, %s326
    %p328 = scmp.eq.s32.totalorder %s29, 0
    %p329 = por %p327, %p328
    %s331 = sadd.s32 %s330, 1
    %p334 = scmp.eq.s32.totalorder %s23, 1
    %p335 = scmp.ne.s32.totalorder %s330, %s332
    %p336 = scmp.eq.s32.totalorder %s23, 0
    %p337 = por %p335, %p336
    %p338 = scmp.ne.s32.totalorder %s330, %s332
    %p339 = scmp.eq.s32.totalorder %s28, 1
    %p340 = por %p338, %p339
    %p341 = scmp.ne.s32.totalorder %s332, %s333
    %p342 = scmp.eq.s32.totalorder %s28, 0
    %p343 = por %p341, %p342
    %p344 = scmp.ne.s32.totalorder %s332, %s333
    %p345 = scmp.eq.s32.totalorder %s29, 1
    %p346 = por %p344, %p345
    %p348 = scmp.ne.s32.totalorder %s333, %s347
    %p349 = scmp.eq.s32.totalorder %s29, 0
    %p350 = por %p348, %p349
    %s352 = sadd.s32 %s351, 1
    %p355 = scmp.eq.s32.totalorder %s23, 1
    %p356 = scmp.ne.s32.totalorder %s351, %s353
    %p357 = scmp.eq.s32.totalorder %s23, 0
    %p358 = por %p356, %p357
    %p359 = scmp.ne.s32.totalorder %s351, %s353
    %p360 = scmp.eq.s32.totalorder %s28, 1
    %p361 = por %p359, %p360
    %p362 = scmp.ne.s32.totalorder %s353, %s354
    %p363 = scmp.eq.s32.totalorder %s28, 0
    %p364 = por %p362, %p363
    %p365 = scmp.ne.s32.totalorder %s353, %s354
    %p366 = scmp.eq.s32.totalorder %s29, 1
    %p367 = por %p365, %p366
    %p369 = scmp.ne.s32.totalorder %s354, %s368
    %p370 = scmp.eq.s32.totalorder %s29, 0
    %p371 = por %p369, %p370
    %s373 = sadd.s32 %s372, 1
    %p376 = scmp.eq.s32.totalorder %s23, 1
    %p377 = scmp.ne.s32.totalorder %s372, %s374
    %p378 = scmp.eq.s32.totalorder %s23, 0
    %p379 = por %p377, %p378
    %p380 = scmp.ne.s32.totalorder %s372, %s374
    %p381 = scmp.eq.s32.totalorder %s28, 1
    %p382 = por %p380, %p381
    %p383 = scmp.ne.s32.totalorder %s374, %s375
    %p384 = scmp.eq.s32.totalorder %s28, 0
    %p385 = por %p383, %p384
    %p386 = scmp.ne.s32.totalorder %s374, %s375
    %p387 = scmp.eq.s32.totalorder %s29, 1
    %p388 = por %p386, %p387
    %p390 = scmp.ne.s32.totalorder %s375, %s389
    %p391 = scmp.eq.s32.totalorder %s29, 0
    %p392 = por %p390, %p391
    %s393 = ssub.s32 %s23, %s30
    %p394 = scmp.eq.s32.totalorder %s393, 0
    %s396 = sadd.s32 %s395, 1
    %s397 = scalar_select %p394, %s395, %s396
    %p400 = pneg %p394
    %p401 = scmp.eq.s32.totalorder %s23, 1
    %p402 = por %p400, %p401
    %p403 = scmp.ne.s32.totalorder %s395, %s398
    %p404 = scmp.eq.s32.totalorder %s23, 0
    %p405 = por %p403, %p404
    %p406 = scmp.ne.s32.totalorder %s395, %s398
    %p407 = scmp.eq.s32.totalorder %s28, 1
    %p408 = por %p406, %p407
    %p409 = scmp.ne.s32.totalorder %s398, %s399
    %p410 = scmp.eq.s32.totalorder %s28, 0
    %p411 = por %p409, %p410
    %p412 = scmp.ne.s32.totalorder %s398, %s399
    %p413 = scmp.eq.s32.totalorder %s29, 1
    %p414 = por %p412, %p413
    %p416 = scmp.ne.s32.totalorder %s399, %s415
    %p417 = scmp.eq.s32.totalorder %s29, 0
    %p418 = por %p416, %p417
    %p419 = scmp.le.s32.totalorder 1, %s23
    %p420 = scmp.lt.s32.totalorder %s23, 3
    %p421 = pnand %p419, %p420
    %p422 = pneg %p421
    // Predicated region
    $region9: #{csfp_forward.8} parent=5 // pred_check
      _
    $region10: #{csfp_forward.8} parent=5 // pred_check_branch
      %424 = sbr.rel (%p421) target = $region12
    $region11: #{csfp_forward.8} parent=5 // pred_region
      %s425 = ssub.s32 %s23, 1
      // Predicated region
      $region13: #{csfp_forward.8} parent=11 // pred_check
        %p426 = pneg %p70
      $region14: #{csfp_forward.8} parent=11 // pred_check_branch
        %428 = sbr.rel (%p426) target = $region16
      $region15: #{csfp_forward.8} parent=11 // pred_region
        _
      $region16: #{csfp_forward.8} parent=11 // pred_fallthru
        _
      // Predicated region
      $region17: #{csfp_forward.8} parent=11 // pred_check
        %p429 = pneg %p91
      $region18: #{csfp_forward.8} parent=11 // pred_check_branch
        %431 = sbr.rel (%p429) target = $region20
      $region19: #{csfp_forward.8} parent=11 // pred_region
        _
      $region20: #{csfp_forward.8} parent=11 // pred_fallthru
        _
      // Predicated region
      $region21: #{csfp_forward.8} parent=11 // pred_check
        %p432 = pneg %p112
      $region22: #{csfp_forward.8} parent=11 // pred_check_branch
        %434 = sbr.rel (%p432) target = $region24
      $region23: #{csfp_forward.8} parent=11 // pred_region
        _
      $region24: #{csfp_forward.8} parent=11 // pred_fallthru
        _
      // Predicated region
      $region25: #{csfp_forward.8} parent=11 // pred_check
        %p435 = pneg %p133
      $region26: #{csfp_forward.8} parent=11 // pred_check_branch
        %437 = sbr.rel (%p435) target = $region28
      $region27: #{csfp_forward.8} parent=11 // pred_region
        _
      $region28: #{csfp_forward.8} parent=11 // pred_fallthru
        _
      // Predicated region
      $region29: #{csfp_forward.8} parent=11 // pred_check
        %p438 = pneg %p154
      $region30: #{csfp_forward.8} parent=11 // pred_check_branch
        %440 = sbr.rel (%p438) target = $region32
      $region31: #{csfp_forward.8} parent=11 // pred_region
        _
      $region32: #{csfp_forward.8} parent=11 // pred_fallthru
        _
      // Predicated region
      $region33: #{csfp_forward.8} parent=11 // pred_check
        %p441 = pneg %p175
      $region34: #{csfp_forward.8} parent=11 // pred_check_branch
        %443 = sbr.rel (%p441) target = $region36
      $region35: #{csfp_forward.8} parent=11 // pred_region
        _
      $region36: #{csfp_forward.8} parent=11 // pred_fallthru
        _
      // Predicated region
      $region37: #{csfp_forward.8} parent=11 // pred_check
        %p444 = pneg %p196
      $region38: #{csfp_forward.8} parent=11 // pred_check_branch
        %446 = sbr.rel (%p444) target = $region40
      $region39: #{csfp_forward.8} parent=11 // pred_region
        _
      $region40: #{csfp_forward.8} parent=11 // pred_fallthru
        _
      // Predicated region
      $region41: #{csfp_forward.8} parent=11 // pred_check
        %p447 = pneg %p217
      $region42: #{csfp_forward.8} parent=11 // pred_check_branch
        %449 = sbr.rel (%p447) target = $region44
      $region43: #{csfp_forward.8} parent=11 // pred_region
        _
      $region44: #{csfp_forward.8} parent=11 // pred_fallthru
        _
      // Predicated region
      $region45: #{csfp_forward.8} parent=11 // pred_check
        %p450 = pneg %p238
      $region46: #{csfp_forward.8} parent=11 // pred_check_branch
        %452 = sbr.rel (%p450) target = $region48
      $region47: #{csfp_forward.8} parent=11 // pred_region
        _
      $region48: #{csfp_forward.8} parent=11 // pred_fallthru
        _
      // Predicated region
      $region49: #{csfp_forward.8} parent=11 // pred_check
        %p453 = pneg %p259
      $region50: #{csfp_forward.8} parent=11 // pred_check_branch
        %455 = sbr.rel (%p453) target = $region52
      $region51: #{csfp_forward.8} parent=11 // pred_region
        _
      $region52: #{csfp_forward.8} parent=11 // pred_fallthru
        _
      // Predicated region
      $region53: #{csfp_forward.8} parent=11 // pred_check
        %p456 = pneg %p280
      $region54: #{csfp_forward.8} parent=11 // pred_check_branch
        %458 = sbr.rel (%p456) target = $region56
      $region55: #{csfp_forward.8} parent=11 // pred_region
        _
      $region56: #{csfp_forward.8} parent=11 // pred_fallthru
        _
      // Predicated region
      $region57: #{csfp_forward.8} parent=11 // pred_check
        %p459 = pneg %p301
      $region58: #{csfp_forward.8} parent=11 // pred_check_branch
        %461 = sbr.rel (%p459) target = $region60
      $region59: #{csfp_forward.8} parent=11 // pred_region
        _
      $region60: #{csfp_forward.8} parent=11 // pred_fallthru
        _
      // Predicated region
      $region61: #{csfp_forward.8} parent=11 // pred_check
        %p462 = pneg %p322
      $region62: #{csfp_forward.8} parent=11 // pred_check_branch
        %464 = sbr.rel (%p462) target = $region64
      $region63: #{csfp_forward.8} parent=11 // pred_region
        _
      $region64: #{csfp_forward.8} parent=11 // pred_fallthru
        _
      // Predicated region
      $region65: #{csfp_forward.8} parent=11 // pred_check
        %p465 = pneg %p343
      $region66: #{csfp_forward.8} parent=11 // pred_check_branch
        %467 = sbr.rel (%p465) target = $region68
      $region67: #{csfp_forward.8} parent=11 // pred_region
        _
      $region68: #{csfp_forward.8} parent=11 // pred_fallthru
        _
      // Predicated region
      $region69: #{csfp_forward.8} parent=11 // pred_check
        %p468 = pneg %p364
      $region70: #{csfp_forward.8} parent=11 // pred_check_branch
        %470 = sbr.rel (%p468) target = $region72
      $region71: #{csfp_forward.8} parent=11 // pred_region
        _
      $region72: #{csfp_forward.8} parent=11 // pred_fallthru
        _
      // Predicated region
      $region73: #{csfp_forward.8} parent=11 // pred_check
        %p471 = pneg %p385
      $region74: #{csfp_forward.8} parent=11 // pred_check_branch
        %473 = sbr.rel (%p471) target = $region76
      $region75: #{csfp_forward.8} parent=11 // pred_region
        _
      $region76: #{csfp_forward.8} parent=11 // pred_fallthru
        _
    $region12: #{csfp_forward.8} parent=5 // pred_fallthru
      _
    %p474 = scmp.lt.s32.totalorder %s23, 2
    // Predicated region
    $region77: #{csfp_forward.8} parent=5 // pred_check
      %p475 = pneg %p474
    $region78: #{csfp_forward.8} parent=5 // pred_check_branch
      %477 = sbr.rel (%p475) target = $region80
    $region79: #{csfp_forward.8} parent=5 // pred_region
      // Predicated region
      $region81: #{csfp_forward.8} parent=79 // pred_check
        %p478 = pneg %p43
      $region82: #{csfp_forward.8} parent=79 // pred_check_branch
        %480 = sbr.rel (%p478) target = $region84
      $region83: #{csfp_forward.8} parent=79 // pred_region
        %p481 = scmp.lt.s32.totalorder %s23, 1
        %s482 = scalar_select %p481, %s23, 1
        %s483 = smul.addr %s482, 8
        %s484 = scalar_lea.vmem %s0, %s483
      $region84: #{csfp_forward.8} parent=79 // pred_fallthru
        _
    $region80: #{csfp_forward.8} parent=5 // pred_fallthru
      _
    %p485 = scmp.le.s32.totalorder 1, %s23
    %p486 = scmp.lt.s32.totalorder %s23, 3
    %p487 = pnand %p485, %p486
    %p488 = pneg %p487
    // Predicated region
    $region85: #{csfp_forward.8} parent=5 // pred_check
      _
    $region86: #{csfp_forward.8} parent=5 // pred_check_branch
      %490 = sbr.rel (%p487) target = $region88
    $region87: #{csfp_forward.8} parent=5 // pred_region
      %s491 = ssub.s32 %s23, 1
      %p492 = scmp.lt.s32.totalorder %s28, 1
      %s493 = scalar_select %p492, %s28, 1
      %s494 = smul.addr %s493, 8
      %s495 = scalar_lea.vmem %s0, %s494
      %p496 = pneg %p49
      %p497 = pneg %p46
      %p498 = pneg %p70
      %p499 = pneg %p67
      %p500 = pneg %p91
      %p501 = pneg %p88
      %p502 = pneg %p112
      %p503 = pneg %p109
      %p504 = pneg %p133
      %p505 = pneg %p130
      %p506 = pneg %p154
      %p507 = pneg %p151
      %p508 = pneg %p175
      %p509 = pneg %p172
      %p510 = pneg %p196
      %p511 = pneg %p193
      %p512 = pneg %p217
      %p513 = pneg %p214
      %p514 = pneg %p238
      %p515 = pneg %p235
      %p516 = pneg %p259
      %p517 = pneg %p256
      %p518 = pneg %p280
      %p519 = pneg %p277
      %p520 = pneg %p301
      %p521 = pneg %p298
      %p522 = pneg %p322
      %p523 = pneg %p319
      %p524 = pneg %p343
      %p525 = pneg %p340
      %p526 = pneg %p364
      %p527 = pneg %p361
      %p528 = pneg %p385
      %p529 = pneg %p382
      %p530 = pneg %p411
      %p531 = pneg %p408
      %p532 = scmp.lt.s32.totalorder %s28, 1
      %s533 = scalar_select %p532, %s28, 1
      %s534 = smul.addr %s533, 8
      %s535 = scalar_lea.vmem %s17, %s534
      %p536 = scmp.lt.s32.totalorder %s28, 1
      %s537 = scalar_select %p536, %s28, 1
      %s538 = smul.addr %s537, 8
      %s539 = scalar_lea.vmem %s0, %s538
      %p540 = scmp.lt.s32.totalorder %s28, 1
      %s541 = scalar_select %p540, %s28, 1
      %s542 = smul.addr %s541, 8
      %s543 = scalar_lea.vmem %s17, %s542
      %v545 = vld [vmem:[%s539] sm:$0xff]
      %v546 = vld [vmem:[%s1] sm:$0x1]
      %v547 = vld [vmem:[%s2] sm:$0x1]
      %vm548 = vcmask 261120
      %v549 = vsel %vm548, %v545, 0.0
      %550 = vadd.xlane.f32.xlu0 %v549
      %v551 = vpop.xlane.xlu0 %550
      %v552 = vrcp.pop 32.0
      %v553 = vmul.f32 %v551, %v552
      %v554 = vsub.f32 %v545, %v553
      %v555 = vmul.f32 %v554, %v554
      %v556 = vsel %vm548, %v555, 0.0
      %557 = vadd.xlane.f32.xlu0 %v556
      %v558 = vpop.xlane.xlu0 %557
      %v559 = vmul.f32 %v558, %v552
      %v560 = vadd.f32 %v559, 1e-05
      %v561 = vrsqrt.pop %v560
      %v562 = vmul.f32 %v554, %v561
      %v564 = vlaneseq
      %v565 = vshrl.u32 %v564, 7
      %v566 = vsub.s32 0, %v565
      %v567 = vrot.slane %v546, %v566
      %v569 = vmul.f32 %v562, %v567
      %v571 = vlaneseq
      %v572 = vshrl.u32 %v571, 7
      %v573 = vsub.s32 0, %v572
      %v574 = vrot.slane %v547, %v573
      %v576 = vadd.f32 %v569, %v574
      %v577 = vpack.c.bf16 %v576, %v576
      %v578 = vld [vmem:[%s3] sm:$0xf]
      %v579 = vld [vmem:[%s3 + $0x4] sm:$0xf]
      %v580 = vld [vmem:[%s3 + $0x8] sm:$0xf]
      %v581 = vld [vmem:[%s3 + $0xc] sm:$0xf]
      %v582 = vld [vmem:[%s6] sm:$0x1]
      %v584 = vlaneseq
      %v585 = vshrl.u32 %v584, 7
      %v586 = vsub.s32 0, %v585
      %v587 = vrot.slane %v582, %v586
      %v593 = vunpack.c.l.b16 %v578
      %v594 = vunpack.c.l.b16 %v579
      %v595 = vunpack.c.l.b16 %v580
      %v596 = vunpack.c.l.b16 %v581
      %v597 = vpack.c.b16 %v594, %v593
      %v598 = vpack.c.b16 %v596, %v595
      %v602 = vsel %vm548, %v577, 0
      %604 = vmatprep.subr.bf16.mxu0 0
      %605 = vmatpush1.bf16.msra.mxu0 0
      %606 = vmatprep.subr.bf16.mxu0 0
      %607 = vmatpush1.bf16.msra.mxu0 0
      %608 = vmatprep.subr.bf16.mxu0 0
      %609 = vmatpush1.bf16.msra.mxu0 0
      %610 = vmatprep.subr.bf16.mxu0 0
      %611 = vmatpush1.bf16.msra.mxu0 0
      %612 = vmatprep.subr.bf16.mxu0 0
      %613 = vmatpush1.bf16.msra.mxu0 0
      %614 = vmatprep.subr.bf16.mxu0 0
      %615 = vmatpush1.bf16.msra.mxu0 0
      %616 = vmatprep.subr.bf16.mxu0 0
      %617 = vmatpush1.bf16.msra.mxu0 %v598
      %618 = vmatprep.subr.bf16.mxu0 0
      %619 = vmatpush1.bf16.msra.mxu0 %v597
      %620 = vmatprep.subr.bf16.mxu0 0
      %621 = vmatpush2.bf16.msra.mxu0 0
      %622 = vmatprep.subr.bf16.mxu0 0
      %623 = vmatpush2.bf16.msra.mxu0 0
      %624 = vmatprep.subr.bf16.mxu0 0
      %625 = vmatpush2.bf16.msra.mxu0 0
      %626 = vmatprep.subr.bf16.mxu0 0
      %627 = vmatpush2.bf16.msra.mxu0 0
      %628 = vmatprep.subr.bf16.mxu0 0
      %629 = vmatpush2.bf16.msra.mxu0 0
      %630 = vmatprep.subr.bf16.mxu0 0
      %631 = vmatpush2.bf16.msra.mxu0 0
      %632 = vmatprep.subr.bf16.mxu0 0
      %633 = vmatpush2.bf16.msra.mxu0 0
      %634 = vmatprep.subr.bf16.mxu0 0
      %635 = vmatpush2.bf16.msra.mxu0 0
      %636 = vmatprep.mubr.bf16.mxu0 0
      %637 = vmatmul.mubr.bf16.gmra.mxu0 %v602
      %v638 = vpop.f32.mrf.mxu0
      %v639 = vadd.f32 %v587, %v638
      %v640 = vpop.f32.mrf.mxu0
      %v641 = vpop.f32.mrf.mxu0
      %v642 = vpop.f32.mrf.mxu0
      %643 = vdwg.mxu0
      %v644 = vmul.f32 %v639, 0.35355338
      %v645 = vpack.c.bf16 %v644, %v644
      %v646 = vld [vmem:[%s4] sm:$0xf]
      %v647 = vld [vmem:[%s4 + $0x4] sm:$0xf]
      %v648 = vld [vmem:[%s4 + $0x8] sm:$0xf]
      %v649 = vld [vmem:[%s4 + $0xc] sm:$0xf]
      %v650 = vld [vmem:[%s7] sm:$0x1]
      %v652 = vlaneseq
      %v653 = vshrl.u32 %v652, 7
      %v654 = vsub.s32 0, %v653
      %v655 = vrot.slane %v650, %v654
      %v661 = vunpack.c.l.b16 %v646
      %v662 = vunpack.c.l.b16 %v647
      %v663 = vunpack.c.l.b16 %v648
      %v664 = vunpack.c.l.b16 %v649
      %v665 = vpack.c.b16 %v662, %v661
      %v666 = vpack.c.b16 %v664, %v663
      %669 = vmatprep.subr.bf16.mxu0 0
      %670 = vmatpush1.bf16.msra.mxu0 0
      %671 = vmatprep.subr.bf16.mxu0 0
      %672 = vmatpush1.bf16.msra.mxu0 0
      %673 = vmatprep.subr.bf16.mxu0 0
      %674 = vmatpush1.bf16.msra.mxu0 0
      %675 = vmatprep.subr.bf16.mxu0 0
      %676 = vmatpush1.bf16.msra.mxu0 0
      %677 = vmatprep.subr.bf16.mxu0 0
      %678 = vmatpush1.bf16.msra.mxu0 0
      %679 = vmatprep.subr.bf16.mxu0 0
      %680 = vmatpush1.bf16.msra.mxu0 0
      %681 = vmatprep.subr.bf16.mxu0 0
      %682 = vmatpush1.bf16.msra.mxu0 %v666
      %683 = vmatprep.subr.bf16.mxu0 0
      %684 = vmatpush1.bf16.msra.mxu0 %v665
      %685 = vmatprep.subr.bf16.mxu0 0
      %686 = vmatpush2.bf16.msra.mxu0 0
      %687 = vmatprep.subr.bf16.mxu0 0
      %688 = vmatpush2.bf16.msra.mxu0 0
      %689 = vmatprep.subr.bf16.mxu0 0
      %690 = vmatpush2.bf16.msra.mxu0 0
      %691 = vmatprep.subr.bf16.mxu0 0
      %692 = vmatpush2.bf16.msra.mxu0 0
      %693 = vmatprep.subr.bf16.mxu0 0
      %694 = vmatpush2.bf16.msra.mxu0 0
      %695 = vmatprep.subr.bf16.mxu0 0
      %696 = vmatpush2.bf16.msra.mxu0 0
      %697 = vmatprep.subr.bf16.mxu0 0
      %698 = vmatpush2.bf16.msra.mxu0 0
      %699 = vmatprep.subr.bf16.mxu0 0
      %700 = vmatpush2.bf16.msra.mxu0 0
      %701 = vmatprep.mubr.bf16.mxu0 0
      %702 = vmatmul.mubr.bf16.gmra.mxu0 %v602
      %v703 = vpop.f32.mrf.mxu0
      %v704 = vadd.f32 %v655, %v703
      %v705 = vpop.f32.mrf.mxu0
      %v706 = vpop.f32.mrf.mxu0
      %v707 = vpop.f32.mrf.mxu0
      %708 = vdwg.mxu0
      %v709 = vpack.c.bf16 %v704, %v704
      %v710 = vld [vmem:[%s5] sm:$0xf]
      %v711 = vld [vmem:[%s5 + $0x4] sm:$0xf]
      %v712 = vld [vmem:[%s5 + $0x8] sm:$0xf]
      %v713 = vld [vmem:[%s5 + $0xc] sm:$0xf]
      %v714 = vld [vmem:[%s8] sm:$0x1]
      %v716 = vlaneseq
      %v717 = vshrl.u32 %v716, 7
      %v718 = vsub.s32 0, %v717
      %v719 = vrot.slane %v714, %v718
      %v725 = vunpack.c.l.b16 %v710
      %v726 = vunpack.c.l.b16 %v711
      %v727 = vunpack.c.l.b16 %v712
      %v728 = vunpack.c.l.b16 %v713
      %v729 = vpack.c.b16 %v726, %v725
      %v730 = vpack.c.b16 %v728, %v727
      %733 = vmatprep.subr.bf16.mxu0 0
      %734 = vmatpush1.bf16.msra.mxu0 0
      %735 = vmatprep.subr.bf16.mxu0 0
      %736 = vmatpush1.bf16.msra.mxu0 0
      %737 = vmatprep.subr.bf16.mxu0 0
      %738 = vmatpush1.bf16.msra.mxu0 0
      %739 = vmatprep.subr.bf16.mxu0 0
      %740 = vmatpush1.bf16.msra.mxu0 0
      %741 = vmatprep.subr.bf16.mxu0 0
      %742 = vmatpush1.bf16.msra.mxu0 0
      %743 = vmatprep.subr.bf16.mxu0 0
      %744 = vmatpush1.bf16.msra.mxu0 0
      %745 = vmatprep.subr.bf16.mxu0 0
      %746 = vmatpush1.bf16.msra.mxu0 %v730
      %747 = vmatprep.subr.bf16.mxu0 0
      %748 = vmatpush1.bf16.msra.mxu0 %v729
      %749 = vmatprep.subr.bf16.mxu0 0
      %750 = vmatpush2.bf16.msra.mxu0 0
      %751 = vmatprep.subr.bf16.mxu0 0
      %752 = vmatpush2.bf16.msra.mxu0 0
      %753 = vmatprep.subr.bf16.mxu0 0
      %754 = vmatpush2.bf16.msra.mxu0 0
      %755 = vmatprep.subr.bf16.mxu0 0
      %756 = vmatpush2.bf16.msra.mxu0 0
      %757 = vmatprep.subr.bf16.mxu0 0
      %758 = vmatpush2.bf16.msra.mxu0 0
      %759 = vmatprep.subr.bf16.mxu0 0
      %760 = vmatpush2.bf16.msra.mxu0 0
      %761 = vmatprep.subr.bf16.mxu0 0
      %762 = vmatpush2.bf16.msra.mxu0 0
      %763 = vmatprep.subr.bf16.mxu0 0
      %764 = vmatpush2.bf16.msra.mxu0 0
      %765 = vmatprep.mubr.bf16.mxu0 0
      %766 = vmatmul.mubr.bf16.gmra.mxu0 %v602
      %v767 = vpop.f32.mrf.mxu0
      %v768 = vadd.f32 %v719, %v767
      %v769 = vpop.f32.mrf.mxu0
      %v770 = vpop.f32.mrf.mxu0
      %v771 = vpop.f32.mrf.mxu0
      %772 = vdwg.mxu0
      %v773 = vpack.c.bf16 %v768, %v768
      %775 = vrot.lane.b32.xlu0 %v645, 120
      %v776 = vpop.permute.xlu0 %775
      %777 = vrot.lane.b32.xlu0 %v645, 112
      %v778 = vpop.permute.xlu0 %777
      %779 = vrot.lane.b32.xlu0 %v645, 104
      %v780 = vpop.permute.xlu0 %779
      %782 = vrot.lane.b32.xlu0 %v709, 120
      %v783 = vpop.permute.xlu0 %782
      %784 = vrot.lane.b32.xlu0 %v709, 112
      %v785 = vpop.permute.xlu0 %784
      %786 = vrot.lane.b32.xlu0 %v709, 104
      %v787 = vpop.permute.xlu0 %786
      %789 = vrot.lane.b32.xlu0 %v773, 120
      %v790 = vpop.permute.xlu0 %789
      %791 = vrot.lane.b32.xlu0 %v773, 112
      %v792 = vpop.permute.xlu0 %791
      %793 = vrot.lane.b32.xlu0 %v773, 104
      %v794 = vpop.permute.xlu0 %793
      %vm795 = vcmask 64512
      %v797 = vsel %vm795, %v645, 0
      %v800 = vsel %vm795, %v709, 0
      %802 = vmatprep.subr.bf16.mxu0 0
      %803 = vmatpush1.bf16.xpose.msra.mxu0 0
      %804 = vmatprep.subr.bf16.mxu0 0
      %805 = vmatpush1.bf16.xpose.msra.mxu0 0
      %806 = vmatprep.subr.bf16.mxu0 0
      %807 = vmatpush1.bf16.xpose.msra.mxu0 0
      %808 = vmatprep.subr.bf16.mxu0 0
      %809 = vmatpush1.bf16.xpose.msra.mxu0 0
      %810 = vmatprep.subr.bf16.mxu0 0
      %811 = vmatpush1.bf16.xpose.msra.mxu0 0
      %812 = vmatprep.subr.bf16.mxu0 0
      %813 = vmatpush1.bf16.xpose.msra.mxu0 0
      %814 = vmatprep.subr.bf16.mxu0 0
      %815 = vmatpush1.bf16.xpose.msra.mxu0 0
      %816 = vmatprep.subr.bf16.mxu0 0
      %817 = vmatpush1.bf16.xpose.msra.mxu0 %v800
      %818 = vmatprep.subr.bf16.mxu0 0
      %819 = vmatpush2.bf16.xpose.msra.mxu0 0
      %820 = vmatprep.subr.bf16.mxu0 0
      %821 = vmatpush2.bf16.xpose.msra.mxu0 0
      %822 = vmatprep.subr.bf16.mxu0 0
      %823 = vmatpush2.bf16.xpose.msra.mxu0 0
      %824 = vmatprep.subr.bf16.mxu0 0
      %825 = vmatpush2.bf16.xpose.msra.mxu0 0
      %826 = vmatprep.subr.bf16.mxu0 0
      %827 = vmatpush2.bf16.xpose.msra.mxu0 0
      %828 = vmatprep.subr.bf16.mxu0 0
      %829 = vmatpush2.bf16.xpose.msra.mxu0 0
      %830 = vmatprep.subr.bf16.mxu0 0
      %831 = vmatpush2.bf16.xpose.msra.mxu0 0
      %832 = vmatprep.subr.bf16.mxu0 0
      %833 = vmatpush2.bf16.xpose.msra.mxu0 0
      %834 = vmatprep.mubr.bf16.mxu0 0
      %835 = vmatmul.mubr.bf16.gmra.mxu0 %v797
      %v836 = vpop.f32.mrf.mxu0
      %v837 = vadd.f32 0.0, %v836
      %v838 = vpop.f32.mrf.mxu0
      %v839 = vpop.f32.mrf.mxu0
      %v840 = vpop.f32.mrf.mxu0
      %841 = vdwg.mxu0
      %v843 = vsel %vm795, %v776, 0
      %v846 = vsel %vm795, %v783, 0
      %848 = vmatprep.subr.bf16.mxu0 0
      %849 = vmatpush1.bf16.xpose.msra.mxu0 0
      %850 = vmatprep.subr.bf16.mxu0 0
      %851 = vmatpush1.bf16.xpose.msra.mxu0 0
      %852 = vmatprep.subr.bf16.mxu0 0
      %853 = vmatpush1.bf16.xpose.msra.mxu0 0
      %854 = vmatprep.subr.bf16.mxu0 0
      %855 = vmatpush1.bf16.xpose.msra.mxu0 0
      %856 = vmatprep.subr.bf16.mxu0 0
      %857 = vmatpush1.bf16.xpose.msra.mxu0 0
      %858 = vmatprep.subr.bf16.mxu0 0
      %859 = vmatpush1.bf16.xpose.msra.mxu0 0
      %860 = vmatprep.subr.bf16.mxu0 0
      %861 = vmatpush1.bf16.xpose.msra.mxu0 0
      %862 = vmatprep.subr.bf16.mxu0 0
      %863 = vmatpush1.bf16.xpose.msra.mxu0 %v846
      %864 = vmatprep.subr.bf16.mxu0 0
      %865 = vmatpush2.bf16.xpose.msra.mxu0 0
      %866 = vmatprep.subr.bf16.mxu0 0
      %867 = vmatpush2.bf16.xpose.msra.mxu0 0
      %868 = vmatprep.subr.bf16.mxu0 0
      %869 = vmatpush2.bf16.xpose.msra.mxu0 0
      %870 = vmatprep.subr.bf16.mxu0 0
      %871 = vmatpush2.bf16.xpose.msra.mxu0 0
      %872 = vmatprep.subr.bf16.mxu0 0
      %873 = vmatpush2.bf16.xpose.msra.mxu0 0
      %874 = vmatprep.subr.bf16.mxu0 0
      %875 = vmatpush2.bf16.xpose.msra.mxu0 0
      %876 = vmatprep.subr.bf16.mxu0 0
      %877 = vmatpush2.bf16.xpose.msra.mxu0 0
      %878 = vmatprep.subr.bf16.mxu0 0
      %879 = vmatpush2.bf16.xpose.msra.mxu0 0
      %880 = vmatprep.mubr.bf16.mxu0 0
      %881 = vmatmul.mubr.bf16.gmra.mxu0 %v843
      %v882 = vpop.f32.mrf.mxu0
      %v883 = vadd.f32 0.0, %v882
      %v884 = vpop.f32.mrf.mxu0
      %v885 = vpop.f32.mrf.mxu0
      %v886 = vpop.f32.mrf.mxu0
      %887 = vdwg.mxu0
      %v889 = vsel %vm795, %v778, 0
      %v892 = vsel %vm795, %v785, 0
      %894 = vmatprep.subr.bf16.mxu0 0
      %895 = vmatpush1.bf16.xpose.msra.mxu0 0
      %896 = vmatprep.subr.bf16.mxu0 0
      %897 = vmatpush1.bf16.xpose.msra.mxu0 0
      %898 = vmatprep.subr.bf16.mxu0 0
      %899 = vmatpush1.bf16.xpose.msra.mxu0 0
      %900 = vmatprep.subr.bf16.mxu0 0
      %901 = vmatpush1.bf16.xpose.msra.mxu0 0
      %902 = vmatprep.subr.bf16.mxu0 0
      %903 = vmatpush1.bf16.xpose.msra.mxu0 0
      %904 = vmatprep.subr.bf16.mxu0 0
      %905 = vmatpush1.bf16.xpose.msra.mxu0 0
      %906 = vmatprep.subr.bf16.mxu0 0
      %907 = vmatpush1.bf16.xpose.msra.mxu0 0
      %908 = vmatprep.subr.bf16.mxu0 0
      %909 = vmatpush1.bf16.xpose.msra.mxu0 %v892
      %910 = vmatprep.subr.bf16.mxu0 0
      %911 = vmatpush2.bf16.xpose.msra.mxu0 0
      %912 = vmatprep.subr.bf16.mxu0 0
      %913 = vmatpush2.bf16.xpose.msra.mxu0 0
      %914 = vmatprep.subr.bf16.mxu0 0
      %915 = vmatpush2.bf16.xpose.msra.mxu0 0
      %916 = vmatprep.subr.bf16.mxu0 0
      %917 = vmatpush2.bf16.xpose.msra.mxu0 0
      %918 = vmatprep.subr.bf16.mxu0 0
      %919 = vmatpush2.bf16.xpose.msra.mxu0 0
      %920 = vmatprep.subr.bf16.mxu0 0
      %921 = vmatpush2.bf16.xpose.msra.mxu0 0
      %922 = vmatprep.subr.bf16.mxu0 0
      %923 = vmatpush2.bf16.xpose.msra.mxu0 0
      %924 = vmatprep.subr.bf16.mxu0 0
      %925 = vmatpush2.bf16.xpose.msra.mxu0 0
      %926 = vmatprep.mubr.bf16.mxu0 0
      %927 = vmatmul.mubr.bf16.gmra.mxu0 %v889
      %v928 = vpop.f32.mrf.mxu0
      %v929 = vadd.f32 0.0, %v928
      %v930 = vpop.f32.mrf.mxu0
      %v931 = vpop.f32.mrf.mxu0
      %v932 = vpop.f32.mrf.mxu0
      %933 = vdwg.mxu0
      %v935 = vsel %vm795, %v780, 0
      %v938 = vsel %vm795, %v787, 0
      %940 = vmatprep.subr.bf16.mxu0 0
      %941 = vmatpush1.bf16.xpose.msra.mxu0 0
      %942 = vmatprep.subr.bf16.mxu0 0
      %943 = vmatpush1.bf16.xpose.msra.mxu0 0
      %944 = vmatprep.subr.bf16.mxu0 0
      %945 = vmatpush1.bf16.xpose.msra.mxu0 0
      %946 = vmatprep.subr.bf16.mxu0 0
      %947 = vmatpush1.bf16.xpose.msra.mxu0 0
      %948 = vmatprep.subr.bf16.mxu0 0
      %949 = vmatpush1.bf16.xpose.msra.mxu0 0
      %950 = vmatprep.subr.bf16.mxu0 0
      %951 = vmatpush1.bf16.xpose.msra.mxu0 0
      %952 = vmatprep.subr.bf16.mxu0 0
      %953 = vmatpush1.bf16.xpose.msra.mxu0 0
      %954 = vmatprep.subr.bf16.mxu0 0
      %955 = vmatpush1.bf16.xpose.msra.mxu0 %v938
      %956 = vmatprep.subr.bf16.mxu0 0
      %957 = vmatpush2.bf16.xpose.msra.mxu0 0
      %958 = vmatprep.subr.bf16.mxu0 0
      %959 = vmatpush2.bf16.xpose.msra.mxu0 0
      %960 = vmatprep.subr.bf16.mxu0 0
      %961 = vmatpush2.bf16.xpose.msra.mxu0 0
      %962 = vmatprep.subr.bf16.mxu0 0
      %963 = vmatpush2.bf16.xpose.msra.mxu0 0
      %964 = vmatprep.subr.bf16.mxu0 0
      %965 = vmatpush2.bf16.xpose.msra.mxu0 0
      %966 = vmatprep.subr.bf16.mxu0 0
      %967 = vmatpush2.bf16.xpose.msra.mxu0 0
      %968 = vmatprep.subr.bf16.mxu0 0
      %969 = vmatpush2.bf16.xpose.msra.mxu0 0
      %970 = vmatprep.subr.bf16.mxu0 0
      %971 = vmatpush2.bf16.xpose.msra.mxu0 0
      %972 = vmatprep.mubr.bf16.mxu0 0
      %973 = vmatmul.mubr.bf16.gmra.mxu0 %v935
      %v974 = vpop.f32.mrf.mxu0
      %v975 = vadd.f32 0.0, %v974
      %v976 = vpop.f32.mrf.mxu0
      %v977 = vpop.f32.mrf.mxu0
      %v978 = vpop.f32.mrf.mxu0
      %979 = vdwg.mxu0
      %v980 = vsel %vm795, %v837, -inf
      %981 = vmax.xlane.f32.xlu0 %v980
      %v982 = vpop.xlane.xlu0 %981
      %v983 = vsel %vm795, %v883, -inf
      %984 = vmax.xlane.f32.xlu0 %v983
      %v985 = vpop.xlane.xlu0 %984
      %v986 = vsel %vm795, %v929, -inf
      %987 = vmax.xlane.f32.xlu0 %v986
      %v988 = vpop.xlane.xlu0 %987
      %v989 = vsel %vm795, %v975, -inf
      %990 = vmax.xlane.f32.xlu0 %v989
      %v991 = vpop.xlane.xlu0 %990
      %v992 = vsub.f32 %v837, %v982
      %v993 = vsub.f32 %v883, %v985
      %v994 = vsub.f32 %v929, %v988
      %v995 = vsub.f32 %v975, %v991
      %v996 = vmul.f32 %v992, 1.442695
      %v997 = vpow.pop %v996
      %v998 = vmul.f32 %v993, 1.442695
      %v999 = vpow.pop %v998
      %v1000 = vmul.f32 %v994, 1.442695
      %v1001 = vpow.pop %v1000
      %v1002 = vmul.f32 %v995, 1.442695
      %v1003 = vpow.pop %v1002
      %v1004 = vsel %vm795, %v997, 0.0
      %1005 = vadd.xlane.f32.xlu0 %v1004
      %v1006 = vpop.xlane.xlu0 %1005
      %v1007 = vsel %vm795, %v999, 0.0
      %1008 = vadd.xlane.f32.xlu0 %v1007
      %v1009 = vpop.xlane.xlu0 %1008
      %v1010 = vsel %vm795, %v1001, 0.0
      %1011 = vadd.xlane.f32.xlu0 %v1010
      %v1012 = vpop.xlane.xlu0 %1011
      %v1013 = vsel %vm795, %v1003, 0.0
      %1014 = vadd.xlane.f32.xlu0 %v1013
      %v1015 = vpop.xlane.xlu0 %1014
      %v1016 = vrcp.pop %v1006
      %v1017 = vrcp.pop %v1009
      %v1018 = vrcp.pop %v1012
      %v1019 = vrcp.pop %v1015
      %v1020 = vmul.f32 %v997, %v1016
      %v1021 = vmul.f32 %v999, %v1017
      %v1022 = vmul.f32 %v1001, %v1018
      %v1023 = vmul.f32 %v1003, %v1019
      %v1024 = vpack.c.bf16 %v1020, %v1020
      %v1025 = vpack.c.bf16 %v1021, %v1021
      %v1026 = vpack.c.bf16 %v1022, %v1022
      %v1027 = vpack.c.bf16 %v1023, %v1023
      %v1029 = vsel %vm795, %v1024, 0
      %vm1031 = vcmask 1043456
      %v1033 = vsel %vm1031, %v773, 0
      %1035 = vmatprep.subr.bf16.mxu0 0
      %1036 = vmatpush1.bf16.msra.mxu0 0
      %1037 = vmatprep.subr.bf16.mxu0 0
      %1038 = vmatpush1.bf16.msra.mxu0 0
      %1039 = vmatprep.subr.bf16.mxu0 0
      %1040 = vmatpush1.bf16.msra.mxu0 0
      %1041 = vmatprep.subr.bf16.mxu0 0
      %1042 = vmatpush1.bf16.msra.mxu0 0
      %1043 = vmatprep.subr.bf16.mxu0 0
      %1044 = vmatpush1.bf16.msra.mxu0 0
      %1045 = vmatprep.subr.bf16.mxu0 0
      %1046 = vmatpush1.bf16.msra.mxu0 0
      %1047 = vmatprep.subr.bf16.mxu0 0
      %1048 = vmatpush1.bf16.msra.mxu0 0
      %1049 = vmatprep.subr.bf16.mxu0 0
      %1050 = vmatpush1.bf16.msra.mxu0 %v1033
      %1051 = vmatprep.subr.bf16.mxu0 0
      %1052 = vmatpush2.bf16.msra.mxu0 0
      %1053 = vmatprep.subr.bf16.mxu0 0
      %1054 = vmatpush2.bf16.msra.mxu0 0
      %1055 = vmatprep.subr.bf16.mxu0 0
      %1056 = vmatpush2.bf16.msra.mxu0 0
      %1057 = vmatprep.subr.bf16.mxu0 0
      %1058 = vmatpush2.bf16.msra.mxu0 0
      %1059 = vmatprep.subr.bf16.mxu0 0
      %1060 = vmatpush2.bf16.msra.mxu0 0
      %1061 = vmatprep.subr.bf16.mxu0 0
      %1062 = vmatpush2.bf16.msra.mxu0 0
      %1063 = vmatprep.subr.bf16.mxu0 0
      %1064 = vmatpush2.bf16.msra.mxu0 0
      %1065 = vmatprep.subr.bf16.mxu0 0
      %1066 = vmatpush2.bf16.msra.mxu0 0
      %1067 = vmatprep.mubr.bf16.mxu0 0
      %1068 = vmatmul.mubr.bf16.gmra.mxu0 %v1029
      %v1069 = vpop.f32.mrf.mxu0
      %v1070 = vadd.f32 0.0, %v1069
      %v1071 = vpop.f32.mrf.mxu0
      %v1072 = vpop.f32.mrf.mxu0
      %v1073 = vpop.f32.mrf.mxu0
      %1074 = vdwg.mxu0
      %v1076 = vsel %vm795, %v1025, 0
      %v1079 = vsel %vm1031, %v790, 0
      %1081 = vmatprep.subr.bf16.mxu0 0
      %1082 = vmatpush1.bf16.msra.mxu0 0
      %1083 = vmatprep.subr.bf16.mxu0 0
      %1084 = vmatpush1.bf16.msra.mxu0 0
      %1085 = vmatprep.subr.bf16.mxu0 0
      %1086 = vmatpush1.bf16.msra.mxu0 0
      %1087 = vmatprep.subr.bf16.mxu0 0
      %1088 = vmatpush1.bf16.msra.mxu0 0
      %1089 = vmatprep.subr.bf16.mxu0 0
      %1090 = vmatpush1.bf16.msra.mxu0 0
      %1091 = vmatprep.subr.bf16.mxu0 0
      %1092 = vmatpush1.bf16.msra.mxu0 0
      %1093 = vmatprep.subr.bf16.mxu0 0
      %1094 = vmatpush1.bf16.msra.mxu0 0
      %1095 = vmatprep.subr.bf16.mxu0 0
      %1096 = vmatpush1.bf16.msra.mxu0 %v1079
      %1097 = vmatprep.subr.bf16.mxu0 0
      %1098 = vmatpush2.bf16.msra.mxu0 0
      %1099 = vmatprep.subr.bf16.mxu0 0
      %1100 = vmatpush2.bf16.msra.mxu0 0
      %1101 = vmatprep.subr.bf16.mxu0 0
      %1102 = vmatpush2.bf16.msra.mxu0 0
      %1103 = vmatprep.subr.bf16.mxu0 0
      %1104 = vmatpush2.bf16.msra.mxu0 0
      %1105 = vmatprep.subr.bf16.mxu0 0
      %1106 = vmatpush2.bf16.msra.mxu0 0
      %1107 = vmatprep.subr.bf16.mxu0 0
      %1108 = vmatpush2.bf16.msra.mxu0 0
      %1109 = vmatprep.subr.bf16.mxu0 0
      %1110 = vmatpush2.bf16.msra.mxu0 0
      %1111 = vmatprep.subr.bf16.mxu0 0
      %1112 = vmatpush2.bf16.msra.mxu0 0
      %1113 = vmatprep.mubr.bf16.mxu0 0
      %1114 = vmatmul.mubr.bf16.gmra.mxu0 %v1076
      %v1115 = vpop.f32.mrf.mxu0
      %v1116 = vadd.f32 0.0, %v1115
      %v1117 = vpop.f32.mrf.mxu0
      %v1118 = vpop.f32.mrf.mxu0
      %v1119 = vpop.f32.mrf.mxu0
      %1120 = vdwg.mxu0
      %v1122 = vsel %vm795, %v1026, 0
      %v1125 = vsel %vm1031, %v792, 0
      %1127 = vmatprep.subr.bf16.mxu0 0
      %1128 = vmatpush1.bf16.msra.mxu0 0
      %1129 = vmatprep.subr.bf16.mxu0 0
      %1130 = vmatpush1.bf16.msra.mxu0 0
      %1131 = vmatprep.subr.bf16.mxu0 0
      %1132 = vmatpush1.bf16.msra.mxu0 0
      %1133 = vmatprep.subr.bf16.mxu0 0
      %1134 = vmatpush1.bf16.msra.mxu0 0
      %1135 = vmatprep.subr.bf16.mxu0 0
      %1136 = vmatpush1.bf16.msra.mxu0 0
      %1137 = vmatprep.subr.bf16.mxu0 0
      %1138 = vmatpush1.bf16.msra.mxu0 0
      %1139 = vmatprep.subr.bf16.mxu0 0
      %1140 = vmatpush1.bf16.msra.mxu0 0
      %1141 = vmatprep.subr.bf16.mxu0 0
      %1142 = vmatpush1.bf16.msra.mxu0 %v1125
      %1143 = vmatprep.subr.bf16.mxu0 0
      %1144 = vmatpush2.bf16.msra.mxu0 0
      %1145 = vmatprep.subr.bf16.mxu0 0
      %1146 = vmatpush2.bf16.msra.mxu0 0
      %1147 = vmatprep.subr.bf16.mxu0 0
      %1148 = vmatpush2.bf16.msra.mxu0 0
      %1149 = vmatprep.subr.bf16.mxu0 0
      %1150 = vmatpush2.bf16.msra.mxu0 0
      %1151 = vmatprep.subr.bf16.mxu0 0
      %1152 = vmatpush2.bf16.msra.mxu0 0
      %1153 = vmatprep.subr.bf16.mxu0 0
      %1154 = vmatpush2.bf16.msra.mxu0 0
      %1155 = vmatprep.subr.bf16.mxu0 0
      %1156 = vmatpush2.bf16.msra.mxu0 0
      %1157 = vmatprep.subr.bf16.mxu0 0
      %1158 = vmatpush2.bf16.msra.mxu0 0
      %1159 = vmatprep.mubr.bf16.mxu0 0
      %1160 = vmatmul.mubr.bf16.gmra.mxu0 %v1122
      %v1161 = vpop.f32.mrf.mxu0
      %v1162 = vadd.f32 0.0, %v1161
      %v1163 = vpop.f32.mrf.mxu0
      %v1164 = vpop.f32.mrf.mxu0
      %v1165 = vpop.f32.mrf.mxu0
      %1166 = vdwg.mxu0
      %v1168 = vsel %vm795, %v1027, 0
      %v1171 = vsel %vm1031, %v794, 0
      %1173 = vmatprep.subr.bf16.mxu0 0
      %1174 = vmatpush1.bf16.msra.mxu0 0
      %1175 = vmatprep.subr.bf16.mxu0 0
      %1176 = vmatpush1.bf16.msra.mxu0 0
      %1177 = vmatprep.subr.bf16.mxu0 0
      %1178 = vmatpush1.bf16.msra.mxu0 0
      %1179 = vmatprep.subr.bf16.mxu0 0
      %1180 = vmatpush1.bf16.msra.mxu0 0
      %1181 = vmatprep.subr.bf16.mxu0 0
      %1182 = vmatpush1.bf16.msra.mxu0 0
      %1183 = vmatprep.subr.bf16.mxu0 0
      %1184 = vmatpush1.bf16.msra.mxu0 0
      %1185 = vmatprep.subr.bf16.mxu0 0
      %1186 = vmatpush1.bf16.msra.mxu0 0
      %1187 = vmatprep.subr.bf16.mxu0 0
      %1188 = vmatpush1.bf16.msra.mxu0 %v1171
      %1189 = vmatprep.subr.bf16.mxu0 0
      %1190 = vmatpush2.bf16.msra.mxu0 0
      %1191 = vmatprep.subr.bf16.mxu0 0
      %1192 = vmatpush2.bf16.msra.mxu0 0
      %1193 = vmatprep.subr.bf16.mxu0 0
      %1194 = vmatpush2.bf16.msra.mxu0 0
      %1195 = vmatprep.subr.bf16.mxu0 0
      %1196 = vmatpush2.bf16.msra.mxu0 0
      %1197 = vmatprep.subr.bf16.mxu0 0
      %1198 = vmatpush2.bf16.msra.mxu0 0
      %1199 = vmatprep.subr.bf16.mxu0 0
      %1200 = vmatpush2.bf16.msra.mxu0 0
      %1201 = vmatprep.subr.bf16.mxu0 0
      %1202 = vmatpush2.bf16.msra.mxu0 0
      %1203 = vmatprep.subr.bf16.mxu0 0
      %1204 = vmatpush2.bf16.msra.mxu0 0
      %1205 = vmatprep.mubr.bf16.mxu0 0
      %1206 = vmatmul.mubr.bf16.gmra.mxu0 %v1168
      %v1207 = vpop.f32.mrf.mxu0
      %v1208 = vadd.f32 0.0, %v1207
      %v1209 = vpop.f32.mrf.mxu0
      %v1210 = vpop.f32.mrf.mxu0
      %v1211 = vpop.f32.mrf.mxu0
      %1212 = vdwg.mxu0
      %1214 = vrot.lane.b32.xlu0 %v1116, 8
      %v1215 = vpop.permute.xlu0 %1214
      %1218 = vrot.lane.b32.xlu0 %v1162, 16
      %v1219 = vpop.permute.xlu0 %1218
      %1222 = vrot.lane.b32.xlu0 %v1208, 24
      %v1223 = vpop.permute.xlu0 %1222
      %v1225 = vsel %vm795, %v1070, %v1215
      %vm1226 = vcmask 130048
      %v1227 = vsel %vm1226, %v1225, %v1219
      %vm1228 = vcmask 195584
      %v1229 = vsel %vm1228, %v1227, %v1223
      %v1230 = vpack.c.bf16 %v1229, %v1229
      %v1231 = vld [vmem:[%s9] sm:$0xf]
      %v1232 = vld [vmem:[%s9 + $0x4] sm:$0xf]
      %v1233 = vld [vmem:[%s9 + $0x8] sm:$0xf]
      %v1234 = vld [vmem:[%s9 + $0xc] sm:$0xf]
      %v1235 = vld [vmem:[%s10] sm:$0x1]
      %v1237 = vlaneseq
      %v1238 = vshrl.u32 %v1237, 7
      %v1239 = vsub.s32 0, %v1238
      %v1240 = vrot.slane %v1235, %v1239
      %v1246 = vunpack.c.l.b16 %v1231
      %v1247 = vunpack.c.l.b16 %v1232
      %v1248 = vunpack.c.l.b16 %v1233
      %v1249 = vunpack.c.l.b16 %v1234
      %v1250 = vpack.c.b16 %v1247, %v1246
      %v1251 = vpack.c.b16 %v1249, %v1248
      %v1255 = vsel %vm548, %v1230, 0
      %1257 = vmatprep.subr.bf16.mxu0 0
      %1258 = vmatpush1.bf16.msra.mxu0 0
      %1259 = vmatprep.subr.bf16.mxu0 0
      %1260 = vmatpush1.bf16.msra.mxu0 0
      %1261 = vmatprep.subr.bf16.mxu0 0
      %1262 = vmatpush1.bf16.msra.mxu0 0
      %1263 = vmatprep.subr.bf16.mxu0 0
      %1264 = vmatpush1.bf16.msra.mxu0 0
      %1265 = vmatprep.subr.bf16.mxu0 0
      %1266 = vmatpush1.bf16.msra.mxu0 0
      %1267 = vmatprep.subr.bf16.mxu0 0
      %1268 = vmatpush1.bf16.msra.mxu0 0
      %1269 = vmatprep.subr.bf16.mxu0 0
      %1270 = vmatpush1.bf16.msra.mxu0 %v1251
      %1271 = vmatprep.subr.bf16.mxu0 0
      %1272 = vmatpush1.bf16.msra.mxu0 %v1250
      %1273 = vmatprep.subr.bf16.mxu0 0
      %1274 = vmatpush2.bf16.msra.mxu0 0
      %1275 = vmatprep.subr.bf16.mxu0 0
      %1276 = vmatpush2.bf16.msra.mxu0 0
      %1277 = vmatprep.subr.bf16.mxu0 0
      %1278 = vmatpush2.bf16.msra.mxu0 0
      %1279 = vmatprep.subr.bf16.mxu0 0
      %1280 = vmatpush2.bf16.msra.mxu0 0
      %1281 = vmatprep.subr.bf16.mxu0 0
      %1282 = vmatpush2.bf16.msra.mxu0 0
      %1283 = vmatprep.subr.bf16.mxu0 0
      %1284 = vmatpush2.bf16.msra.mxu0 0
      %1285 = vmatprep.subr.bf16.mxu0 0
      %1286 = vmatpush2.bf16.msra.mxu0 0
      %1287 = vmatprep.subr.bf16.mxu0 0
      %1288 = vmatpush2.bf16.msra.mxu0 0
      %1289 = vmatprep.mubr.bf16.mxu0 0
      %1290 = vmatmul.mubr.bf16.gmra.mxu0 %v1255
      %v1291 = vpop.f32.mrf.mxu0
      %v1292 = vadd.f32 %v1240, %v1291
      %v1293 = vpop.f32.mrf.mxu0
      %v1294 = vpop.f32.mrf.mxu0
      %v1295 = vpop.f32.mrf.mxu0
      %1296 = vdwg.mxu0
      %v1297 = vadd.f32 %v545, %v1292
      %v1298 = vld [vmem:[%s11] sm:$0x1]
      %v1299 = vld [vmem:[%s12] sm:$0x1]
      %v1300 = vsel %vm548, %v1297, 0.0
      %1301 = vadd.xlane.f32.xlu0 %v1300
      %v1302 = vpop.xlane.xlu0 %1301
      %v1303 = vmul.f32 %v1302, %v552
      %v1304 = vsub.f32 %v1297, %v1303
      %v1305 = vmul.f32 %v1304, %v1304
      %v1306 = vsel %vm548, %v1305, 0.0
      %1307 = vadd.xlane.f32.xlu0 %v1306
      %v1308 = vpop.xlane.xlu0 %1307
      %v1309 = vmul.f32 %v1308, %v552
      %v1310 = vadd.f32 %v1309, 1e-05
      %v1311 = vrsqrt.pop %v1310
      %v1312 = vmul.f32 %v1304, %v1311
      %v1314 = vlaneseq
      %v1315 = vshrl.u32 %v1314, 7
      %v1316 = vsub.s32 0, %v1315
      %v1317 = vrot.slane %v1298, %v1316
      %v1319 = vmul.f32 %v1312, %v1317
      %v1321 = vlaneseq
      %v1322 = vshrl.u32 %v1321, 7
      %v1323 = vsub.s32 0, %v1322
      %v1324 = vrot.slane %v1299, %v1323
      %v1326 = vadd.f32 %v1319, %v1324
      %v1327 = vpack.c.bf16 %v1326, %v1326
      %v1328 = vld [vmem:[%s13] sm:$0xf]
      %v1329 = vld [vmem:[%s13 + $0x4] sm:$0xf]
      %v1330 = vld [vmem:[%s13 + $0x8] sm:$0xf]
      %v1331 = vld [vmem:[%s13 + $0xc] sm:$0xf]
      %v1332 = vld [vmem:[%s14] sm:$0x1]
      %v1334 = vlaneseq
      %v1335 = vshrl.u32 %v1334, 7
      %v1336 = vsub.s32 0, %v1335
      %v1337 = vrot.slane %v1332, %v1336
      %v1343 = vunpack.c.l.b16 %v1328
      %v1344 = vunpack.c.l.b16 %v1329
      %v1345 = vunpack.c.l.b16 %v1330
      %v1346 = vunpack.c.l.b16 %v1331
      %v1347 = vpack.c.b16 %v1344, %v1343
      %v1348 = vpack.c.b16 %v1346, %v1345
      %v1352 = vsel %vm548, %v1327, 0
      %1354 = vmatprep.subr.bf16.mxu0 0
      %1355 = vmatpush1.bf16.msra.mxu0 0
      %1356 = vmatprep.subr.bf16.mxu0 0
      %1357 = vmatpush1.bf16.msra.mxu0 0
      %1358 = vmatprep.subr.bf16.mxu0 0
      %1359 = vmatpush1.bf16.msra.mxu0 0
      %1360 = vmatprep.subr.bf16.mxu0 0
      %1361 = vmatpush1.bf16.msra.mxu0 0
      %1362 = vmatprep.subr.bf16.mxu0 0
      %1363 = vmatpush1.bf16.msra.mxu0 0
      %1364 = vmatprep.subr.bf16.mxu0 0
      %1365 = vmatpush1.bf16.msra.mxu0 0
      %1366 = vmatprep.subr.bf16.mxu0 0
      %1367 = vmatpush1.bf16.msra.mxu0 %v1348
      %1368 = vmatprep.subr.bf16.mxu0 0
      %1369 = vmatpush1.bf16.msra.mxu0 %v1347
      %1370 = vmatprep.subr.bf16.mxu0 0
      %1371 = vmatpush2.bf16.msra.mxu0 0
      %1372 = vmatprep.subr.bf16.mxu0 0
      %1373 = vmatpush2.bf16.msra.mxu0 0
      %1374 = vmatprep.subr.bf16.mxu0 0
      %1375 = vmatpush2.bf16.msra.mxu0 0
      %1376 = vmatprep.subr.bf16.mxu0 0
      %1377 = vmatpush2.bf16.msra.mxu0 0
      %1378 = vmatprep.subr.bf16.mxu0 0
      %1379 = vmatpush2.bf16.msra.mxu0 0
      %1380 = vmatprep.subr.bf16.mxu0 0
      %1381 = vmatpush2.bf16.msra.mxu0 0
      %1382 = vmatprep.subr.bf16.mxu0 0
      %1383 = vmatpush2.bf16.msra.mxu0 0
      %1384 = vmatprep.subr.bf16.mxu0 0
      %1385 = vmatpush2.bf16.msra.mxu0 0
      %1386 = vmatprep.mubr.bf16.mxu0 0
      %1387 = vmatmul.mubr.bf16.gmra.mxu0 %v1352
      %v1388 = vpop.f32.mrf.mxu0
      %v1389 = vadd.f32 %v1337, %v1388
      %v1390 = vpop.f32.mrf.mxu0
      %v1391 = vpop.f32.mrf.mxu0
      %v1392 = vpop.f32.mrf.mxu0
      %1393 = vdwg.mxu0
      %v1394 = vmax.f32 %v1389, 0.0
      %v1395 = vpack.c.bf16 %v1394, %v1394
      %v1396 = vld [vmem:[%s15] sm:$0xf]
      %v1397 = vld [vmem:[%s15 + $0x4] sm:$0xf]
      %v1398 = vld [vmem:[%s15 + $0x8] sm:$0xf]
      %v1399 = vld [vmem:[%s15 + $0xc] sm:$0xf]
      %v1400 = vld [vmem:[%s15 + $0x10] sm:$0xf]
      %v1401 = vld [vmem:[%s15 + $0x14] sm:$0xf]
      %v1402 = vld [vmem:[%s15 + $0x18] sm:$0xf]
      %v1403 = vld [vmem:[%s15 + $0x1c] sm:$0xf]
      %v1404 = vld [vmem:[%s15 + $0x20] sm:$0xf]
      %v1405 = vld [vmem:[%s15 + $0x24] sm:$0xf]
      %v1406 = vld [vmem:[%s15 + $0x28] sm:$0xf]
      %v1407 = vld [vmem:[%s15 + $0x2c] sm:$0xf]
      %v1408 = vld [vmem:[%s15 + $0x30] sm:$0xf]
      %v1409 = vld [vmem:[%s15 + $0x34] sm:$0xf]
      %v1410 = vld [vmem:[%s15 + $0x38] sm:$0xf]
      %v1411 = vld [vmem:[%s15 + $0x3c] sm:$0xf]
      %v1412 = vld [vmem:[%s16] sm:$0x1]
      %v1414 = vlaneseq
      %v1415 = vshrl.u32 %v1414, 7
      %v1416 = vsub.s32 0, %v1415
      %v1417 = vrot.slane %v1412, %v1416
      %v1435 = vunpack.c.l.b16 %v1396
      %v1436 = vunpack.c.l.b16 %v1397
      %v1437 = vunpack.c.l.b16 %v1398
      %v1438 = vunpack.c.l.b16 %v1399
      %v1439 = vunpack.c.l.b16 %v1400
      %v1440 = vunpack.c.l.b16 %v1401
      %v1441 = vunpack.c.l.b16 %v1402
      %v1442 = vunpack.c.l.b16 %v1403
      %v1443 = vunpack.c.l.b16 %v1404
      %v1444 = vunpack.c.l.b16 %v1405
      %v1445 = vunpack.c.l.b16 %v1406
      %v1446 = vunpack.c.l.b16 %v1407
      %v1447 = vunpack.c.l.b16 %v1408
      %v1448 = vunpack.c.l.b16 %v1409
      %v1449 = vunpack.c.l.b16 %v1410
      %v1450 = vunpack.c.l.b16 %v1411
      %v1451 = vpack.c.b16 %v1436, %v1435
      %v1452 = vpack.c.b16 %v1438, %v1437
      %v1453 = vpack.c.b16 %v1440, %v1439
      %v1454 = vpack.c.b16 %v1442, %v1441
      %v1455 = vpack.c.b16 %v1444, %v1443
      %v1456 = vpack.c.b16 %v1446, %v1445
      %v1457 = vpack.c.b16 %v1448, %v1447
      %v1458 = vpack.c.b16 %v1450, %v1449
      %1467 = vmatprep.subr.bf16.mxu0 0
      %1468 = vmatpush1.bf16.msra.mxu0 %v1458
      %1469 = vmatprep.subr.bf16.mxu0 0
      %1470 = vmatpush1.bf16.msra.mxu0 %v1457
      %1471 = vmatprep.subr.bf16.mxu0 0
      %1472 = vmatpush1.bf16.msra.mxu0 %v1456
      %1473 = vmatprep.subr.bf16.mxu0 0
      %1474 = vmatpush1.bf16.msra.mxu0 %v1455
      %1475 = vmatprep.subr.bf16.mxu0 0
      %1476 = vmatpush1.bf16.msra.mxu0 %v1454
      %1477 = vmatprep.subr.bf16.mxu0 0
      %1478 = vmatpush1.bf16.msra.mxu0 %v1453
      %1479 = vmatprep.subr.bf16.mxu0 0
      %1480 = vmatpush1.bf16.msra.mxu0 %v1452
      %1481 = vmatprep.subr.bf16.mxu0 0
      %1482 = vmatpush1.bf16.msra.mxu0 %v1451
      %1483 = vmatprep.subr.bf16.mxu0 0
      %1484 = vmatpush2.bf16.msra.mxu0 0
      %1485 = vmatprep.subr.bf16.mxu0 0
      %1486 = vmatpush2.bf16.msra.mxu0 0
      %1487 = vmatprep.subr.bf16.mxu0 0
      %1488 = vmatpush2.bf16.msra.mxu0 0
      %1489 = vmatprep.subr.bf16.mxu0 0
      %1490 = vmatpush2.bf16.msra.mxu0 0
      %1491 = vmatprep.subr.bf16.mxu0 0
      %1492 = vmatpush2.bf16.msra.mxu0 0
      %1493 = vmatprep.subr.bf16.mxu0 0
      %1494 = vmatpush2.bf16.msra.mxu0 0
      %1495 = vmatprep.subr.bf16.mxu0 0
      %1496 = vmatpush2.bf16.msra.mxu0 0
      %1497 = vmatprep.subr.bf16.mxu0 0
      %1498 = vmatpush2.bf16.msra.mxu0 0
      %1499 = vmatprep.mubr.bf16.mxu0 0
      %1500 = vmatmul.mubr.bf16.gmra.mxu0 %v1395
      %v1501 = vpop.f32.mrf.mxu0
      %v1502 = vadd.f32 %v1417, %v1501
      %v1503 = vpop.f32.mrf.mxu0
      %v1504 = vpop.f32.mrf.mxu0
      %v1505 = vpop.f32.mrf.mxu0
      %1506 = vdwg.mxu0
      %v1507 = vadd.f32 %v1297, %v1502
      %1508 = vst.msk [vmem:[%s543] sm:$0xff] %vm548, %v1507
      %p1509 = scmp.lt.s32.totalorder %s28, 1
      %s1510 = scalar_select %p1509, %s28, 1
      %s1511 = smul.addr %s1510, 8
      %s1512 = scalar_lea.vmem %s17, %s1511
      // Predicated region
      $region89: #{csfp_forward.8} parent=87 // pred_check
        %p1513 = pneg %p408
      $region90: #{csfp_forward.8} parent=87 // pred_check_branch
        %1515 = sbr.rel (%p1513) target = $region92
      $region91: #{csfp_forward.8} parent=87 // pred_region
        _
      $region92: #{csfp_forward.8} parent=87 // pred_fallthru
        _
    $region88: #{csfp_forward.8} parent=5 // pred_fallthru
      _
    %p1516 = scmp.le.s32.totalorder 2, %s23
    // Predicated region
    $region93: #{csfp_forward.8} parent=5 // pred_check
      %p1517 = pneg %p1516
    $region94: #{csfp_forward.8} parent=5 // pred_check_branch
      %1519 = sbr.rel (%p1517) target = $region96
    $region95: #{csfp_forward.8} parent=5 // pred_region
      %s1520 = ssub.s32 %s23, 2
      // Predicated region
      $region97: #{csfp_forward.8} parent=95 // pred_check
        %p1521 = pneg %p414
      $region98: #{csfp_forward.8} parent=95 // pred_check_branch
        %1523 = sbr.rel (%p1521) target = $region100
      $region99: #{csfp_forward.8} parent=95 // pred_region
        %p1524 = scmp.lt.s32.totalorder %s29, 1
        %s1525 = scalar_select %p1524, %s29, 1
        %s1526 = smul.addr %s1525, 8
        %s1527 = scalar_lea.vmem %s17, %s1526
      $region100: #{csfp_forward.8} parent=95 // pred_fallthru
        _
    $region96: #{csfp_forward.8} parent=5 // pred_fallthru
      _
  $region6: #{csfp_forward.8} parent=0 // loop_footer
    %s27 = sadd.s32 1, %s23
  $region7: #{csfp_forward.8} parent=0 // loop_footer_branch
    %22 = sbr.rel target = $region3
  $region8: #{csfp_forward.8} parent=0 // loop_exit
    _

</llo_original>
